<compile_context>
chip_gen: v6e
topology: v6e:2x2x1
jax: 0.10.0
libtpu: 0.0.40
codegen_flags: <defaults>
</compile_context>

<pallas_src>
import functools

import jax
import jax.numpy as jnp
from jax.experimental import pallas as pl
from jax.experimental.pallas import tpu as pltpu


NEG_INF = -0.7 * float(jnp.finfo(jnp.float32).max)


def _vmem_limit_bytes():
    """Per-generation scoped-VMEM budget (v7x has only 64 MiB physical)."""
    try:
        cap = int(pltpu.get_tpu_info().vmem_capacity_bytes)
    except Exception:
        cap = 64 * 1024 * 1024
    return min(100 * 1024 * 1024, (cap * 3) // 4)


VMEM_LIMIT = _vmem_limit_bytes()


def _pick_tile(dim, candidates):
    """Largest candidate that evenly divides dim, else the full dim (always legal)."""
    for c in candidates:
        if dim % c == 0:
            return c
    return dim


# ---------------------------------------------------------------------------
# Tiled linear: y = x @ w_t   (w_t is (in, out)), f32 accumulation in VMEM scratch
# ---------------------------------------------------------------------------
def _matmul_kernel(x_ref, w_ref, o_ref, acc_ref):
    @pl.when(pl.program_id(2) == 0)
    def _init():
        acc_ref[...] = jnp.zeros_like(acc_ref)

    acc_ref[...] += jnp.dot(x_ref[...], w_ref[...], preferred_element_type=jnp.float32)

    @pl.when(pl.program_id(2) == pl.num_programs(2) - 1)
    def _finalize():
        o_ref[...] = acc_ref[...].astype(o_ref.dtype)


def tiled_linear(x2d, w_t, out_dtype=None):
    M, K = x2d.shape
    K2, N = w_t.shape
    assert K == K2
    out_dtype = out_dtype or x2d.dtype
    tm = _pick_tile(M, (512, 256, 128, 64, 32, 16, 8))   # sublane dim: mult of 8 or full
    tn = _pick_tile(N, (512, 256, 128))                  # lane dim: mult of 128 or full
    tk = _pick_tile(K, (1024, 512, 256, 128))            # lane of x / sublane of w
    grid = (M // tm, N // tn, K // tk)
    # NOTE: if the weight-tile DMA is ever exposed, sweep pipeline_mode=pl.Buffered(3)
    # on the w_t BlockSpec (watch VMEM on v7x).
    return pl.pallas_call(
        _matmul_kernel,
        out_shape=jax.ShapeDtypeStruct((M, N), out_dtype),
        grid=grid,
        in_specs=[
            pl.BlockSpec((tm, tk), lambda i, j, k: (i, k)),
            pl.BlockSpec((tk, tn), lambda i, j, k: (k, j)),
        ],
        out_specs=pl.BlockSpec((tm, tn), lambda i, j, k: (i, j)),
        scratch_shapes=[pltpu.VMEM((tm, tn), jnp.float32)],
        compiler_params=pltpu.CompilerParams(
            dimension_semantics=("parallel", "parallel", "arbitrary"),
            vmem_limit_bytes=VMEM_LIMIT,
        ),
    )(x2d, w_t)


# ---------------------------------------------------------------------------
# Fused RMSNorm(kv_latent) + kv_b up-projection
# ---------------------------------------------------------------------------
def _rmsnorm_matmul_kernel(x_ref, g_ref, w_ref, o_ref, *, eps):
    x = x_ref[...].astype(jnp.float32)                       # (tm, K)
    var = jnp.mean(x * x, axis=-1, keepdims=True)
    xn = x * jax.lax.rsqrt(var + eps)
    xn = (xn * g_ref[...].astype(jnp.float32)).astype(w_ref.dtype)
    o_ref[...] = jnp.dot(xn, w_ref[...], preferred_element_type=jnp.float32).astype(o_ref.dtype)


def rmsnorm_linear(x2d, gamma, w_t, eps, out_dtype=None):
    M, K = x2d.shape
    K2, N = w_t.shape
    assert K == K2
    out_dtype = out_dtype or x2d.dtype
    tm = _pick_tile(M, (512, 256, 128, 64, 32, 16, 8))
    tn = _pick_tile(N, (512, 256, 128))
    grid = (M // tm, N // tn)
    g2d = gamma.reshape(1, K).astype(jnp.float32)
    return pl.pallas_call(
        functools.partial(_rmsnorm_matmul_kernel, eps=eps),
        out_shape=jax.ShapeDtypeStruct((M, N), out_dtype),
        grid=grid,
        in_specs=[
            pl.BlockSpec((tm, K), lambda i, j: (i, 0)),
            pl.BlockSpec((1, K), lambda i, j: (0, 0)),
            pl.BlockSpec((K, tn), lambda i, j: (0, j)),
        ],
        out_specs=pl.BlockSpec((tm, tn), lambda i, j: (i, j)),
        compiler_params=pltpu.CompilerParams(
            dimension_semantics=("parallel", "parallel"),
            vmem_limit_bytes=VMEM_LIMIT,
        ),
    )(x2d, g2d, w_t)


# ---------------------------------------------------------------------------
# Flash-style MLA attention, head axis folded into the block.
#   grid (B, Nq, Nk); online softmax over the Nk axis in VMEM scratch.
#   inputs:  q_nope/q_rope/k_nope/v in (B, H, N, D),  k_rope shared (B, N, Dr)
#   output:  (B, N, H*Dv)  -- lane-dense, already in 'b n (h d)' layout
# ---------------------------------------------------------------------------
def _mla_flash_kernel(qn_ref, qr_ref, kn_ref, kr_ref, v_ref, o_ref,
                      m_sc, l_sc, acc_sc, *, causal, tq, tk):
    qi = pl.program_id(1)
    ki = pl.program_id(2)
    H, _, Dv = acc_sc.shape

    @pl.when(ki == 0)
    def _init():
        m_sc[...] = jnp.full_like(m_sc, NEG_INF)
        l_sc[...] = jnp.zeros_like(l_sc)
        acc_sc[...] = jnp.zeros_like(acc_sc)

    def _update():
        qn = qn_ref[...]                                       # (H, tq, Dn) bf16
        qr = qr_ref[...]                                       # (H, tq, Dr) bf16
        kn = kn_ref[...]                                       # (H, tk, Dn) bf16
        kr = kr_ref[...]                                       # (tk, Dr)    bf16 (shared)
        vv = v_ref[...]                                        # (H, tk, Dv) bf16

        # Per-head "nope" scores (batched over heads on the MXU).
        s = jax.lax.dot_general(
            qn, kn, (((2,), (2,)), ((0,), (0,))),
            preferred_element_type=jnp.float32)                # (H, tq, tk) f32
        # Shared-rope scores: fold heads into rows, one 2-D matmul against the single k_rope.
        Dr = qr.shape[-1]
        s_rope = jax.lax.dot_general(
            qr.reshape(H * tq, Dr), kr, (((1,), (1,)), ((), ())),
            preferred_element_type=jnp.float32).reshape(H, tq, tk)
        s = s + s_rope                                         # scale already folded into w_q

        if causal:
            row = qi * tq + jax.lax.broadcasted_iota(jnp.int32, (1, tq, tk), 1)
            col = ki * tk + jax.lax.broadcasted_iota(jnp.int32, (1, tq, tk), 2)
            s = jnp.where(row >= col, s, NEG_INF)

        m_prev = m_sc[...]
        m_new = jnp.maximum(m_prev, jnp.max(s, axis=-1, keepdims=True))
        alpha = jnp.exp(m_prev - m_new)
        p = jnp.exp(s - m_new)
        l_sc[...] = alpha * l_sc[...] + jnp.sum(p, axis=-1, keepdims=True)
        acc_sc[...] = alpha * acc_sc[...] + jax.lax.dot_general(
            p.astype(vv.dtype), vv, (((2,), (1,)), ((0,), (0,))),
            preferred_element_type=jnp.float32)                # (H, tq, Dv)
        m_sc[...] = m_new

    if causal:
        # Skip KV blocks entirely above the diagonal (their DMA is also suppressed
        # by the clamped index_map in mla_attention).
        @pl.when(ki * tk <= qi * tq + (tq - 1))
        def _():
            _update()
    else:
        _update()

    @pl.when(ki == pl.num_programs(2) - 1)
    def _finalize():
        inv_l = pl.reciprocal(l_sc[...], approx=True)          # (H, tq, 1)
        out = acc_sc[...] * inv_l                              # (H, tq, Dv) f32
        # Emit 'b n (h d)' directly: head h occupies lanes [h*Dv, (h+1)*Dv).
        o_ref[...] = jnp.concatenate(
            [out[h] for h in range(H)], axis=-1).astype(o_ref.dtype)


def mla_attention(q_nope, q_rope, k_nope, k_rope, v, *, causal):
    """q_nope/q_rope/k_nope/v: (B, H, N, D*); k_rope: (B, N, Dr) -> (B, N, H*Dv)."""
    B, H, N, Dn = q_nope.shape
    Dr = q_rope.shape[-1]
    Dv = v.shape[-1]
    tq = _pick_tile(N, (512, 256, 128))   # large q tile: K/V re-streamed once per q block
    tk = _pick_tile(N, (128,))            # moderate kv tile bounds the (H,tq,tk) f32 score tile
    nq, nk = N // tq, N // tk

    if causal:
        # Clamp the KV block index above the diagonal so the skipped grid steps
        # re-use the previously fetched tile (no DMA issued).
        def kv_block(i, j):
            return jnp.minimum(j, (i * tq + tq - 1) // tk)
    else:
        def kv_block(i, j):
            return j

    kernel = functools.partial(_mla_flash_kernel, causal=causal, tq=tq, tk=tk)
    grid = (B, nq, nk)
    return pl.pallas_call(
        kernel,
        out_shape=jax.ShapeDtypeStruct((B, N, H * Dv), q_nope.dtype),
        grid=grid,
        in_specs=[
            pl.BlockSpec((None, H, tq, Dn), lambda b, i, j: (b, 0, i, 0)),
            pl.BlockSpec((None, H, tq, Dr), lambda b, i, j: (b, 0, i, 0)),
            pl.BlockSpec((None, H, tk, Dn), lambda b, i, j: (b, 0, kv_block(i, j), 0)),
            pl.BlockSpec((None, tk, Dr), lambda b, i, j: (b, kv_block(i, j), 0)),
            pl.BlockSpec((None, H, tk, Dv), lambda b, i, j: (b, 0, kv_block(i, j), 0)),
        ],
        out_specs=pl.BlockSpec((None, tq, H * Dv), lambda b, i, j: (b, i, 0)),
        scratch_shapes=[
            pltpu.VMEM((H, tq, 1), jnp.float32),    # running max
            pltpu.VMEM((H, tq, 1), jnp.float32),    # running sum
            pltpu.VMEM((H, tq, Dv), jnp.float32),   # output accumulator
        ],
        compiler_params=pltpu.CompilerParams(
            dimension_semantics=("parallel", "parallel", "arbitrary"),
            vmem_limit_bytes=VMEM_LIMIT,
        ),
    )(q_nope, q_rope, k_nope, k_rope, v)


# ---------------------------------------------------------------------------
# Plain-JAX glue: RoPE (interleaved complex rotation), parameter container
# ---------------------------------------------------------------------------
def apply_rope_emb(x, cos, sin):
    """x: (B, N, H, Dr). cos/sin: (N, Dr//2). Matches torch.view_as_complex rotation."""
    dtype = x.dtype
    xf = x.astype(jnp.float32)
    xr = xf[..., 0::2]
    xi = xf[..., 1::2]
    c = cos[None, :, None, :]
    s = sin[None, :, None, :]
    yr = xr * c - xi * s
    yi = xr * s + xi * c
    y = jnp.stack([yr, yi], axis=-1).reshape(x.shape)
    return y.astype(dtype)


def make_rope(n, rope_dim, start_pos=0, base=10000.0):
    half = rope_dim // 2
    inv_freq = 1.0 / (base ** (jnp.arange(0, half, dtype=jnp.float32) * 2.0 / rope_dim))
    pos = jnp.arange(start_pos, start_pos + n, dtype=jnp.float32)
    angles = jnp.outer(pos, inv_freq)
    return jnp.cos(angles), jnp.sin(angles)


class MLAParams:
    def __init__(self, key, dim=512, n_head=8, q_lora_rank=0, kv_lora_rank=128,
                 qk_nope_head_dim=32, qk_rope_head_dim=16, v_head_dim=32):
        assert q_lora_rank == 0  # TODO(synk): low-rank Q branch not implemented (module default is 0)
        self.dim = dim
        self.n_head = n_head
        self.kv_lora_rank = kv_lora_rank
        self.qk_nope_head_dim = qk_nope_head_dim
        self.qk_rope_head_dim = qk_rope_head_dim
        self.qk_head_dim = qk_nope_head_dim + qk_rope_head_dim
        self.v_head_dim = v_head_dim
        self.eps = 1e-6

        k1, k2, k3, k4 = jax.random.split(key, 4)

        def uinit(k, out_f, in_f):                 # PyTorch nn.Linear default init, (out, in)
            bound = 1.0 / (in_f ** 0.5)
            return jax.random.uniform(k, (out_f, in_f), jnp.float32, -bound, bound)

        w_q = uinit(k1, n_head * self.qk_head_dim, dim)
        w_kv_a = uinit(k2, qk_rope_head_dim + kv_lora_rank, dim)
        w_kv_b = uinit(k3, n_head * (qk_nope_head_dim + v_head_dim), kv_lora_rank)
        w_out = uinit(k4, dim, n_head * v_head_dim)

        # Fold the softmax scale (qk_head_dim^-0.5) into w_q: rotation (RoPE) commutes
        # with the scalar, so this is mathematically identical to scaling the scores.
        scale = self.qk_head_dim ** (-0.5)
        w_q_t = w_q.T * scale                                   # (dim, H*Dqk)
        w_kv_a_t = w_kv_a.T                                     # (dim, Dr + Ckv); [:Dr]=k_rope

        # Fused Q + KV_A projection, reordered so slice boundaries are 128-aligned:
        #   [ w_q (H*Dqk=384) | kv_latent (Ckv=128) | k_rope (Dr=16) ]
        self.w_qkva_t = jnp.concatenate(
            [w_q_t, w_kv_a_t[:, qk_rope_head_dim:], w_kv_a_t[:, :qk_rope_head_dim]],
            axis=1).astype(jnp.bfloat16)
        self.w_kv_b_t = w_kv_b.T.astype(jnp.bfloat16)
        self.w_out_t = w_out.T.astype(jnp.bfloat16)
        self.kv_norm_gamma = jnp.ones((kv_lora_rank,), jnp.float32)


def mla_forward(params: MLAParams, x, rope_cos, rope_sin, causal=True):
    """x: (B, N, dim) -> (B, N, dim). use_cache=False path of the PyTorch module."""
    B, N, D = x.shape
    H = params.n_head
    Dn, Dr = params.qk_nope_head_dim, params.qk_rope_head_dim
    Dqk, Dv, Ckv = params.qk_head_dim, params.v_head_dim, params.kv_lora_rank

    x2d = x.reshape(B * N, D).astype(jnp.bfloat16)

    # --- fused Q + KV_A projection (Pallas tiled matmul); 128-aligned slice boundaries ---
    qkva = tiled_linear(x2d, params.w_qkva_t, out_dtype=jnp.bfloat16)    # (B*N, 384+128+16)
    q_flat = qkva[:, : H * Dqk]
    kv_c = qkva[:, H * Dqk: H * Dqk + Ckv]
    k_rope = qkva[:, H * Dqk + Ckv:]

    q = q_flat.reshape(B, N, H, Dqk)
    q_nope = q[..., :Dn]
    q_rope = apply_rope_emb(q[..., Dn:], rope_cos, rope_sin)             # (B, N, H, Dr)
    k_rope = apply_rope_emb(k_rope.reshape(B, N, 1, Dr), rope_cos, rope_sin)
    k_rope = k_rope.reshape(B, N, Dr).astype(jnp.bfloat16)               # shared across heads

    # --- RMSNorm(kv latent) fused with kv_b up-projection (Pallas kernel) ---
    kv = rmsnorm_linear(kv_c, params.kv_norm_gamma, params.w_kv_b_t,
                        params.eps, out_dtype=jnp.bfloat16)              # (B*N, H*(Dn+Dv))
    kv = kv.reshape(B, N, H, Dn + Dv)
    k_nope = kv[..., :Dn]
    v = kv[..., Dn:]

    # (B, H, N, D) layout for attention; k_rope stays single-head (no broadcast/concat).
    q_nope = jnp.transpose(q_nope, (0, 2, 1, 3)).astype(jnp.bfloat16)
    q_rope = jnp.transpose(q_rope, (0, 2, 1, 3)).astype(jnp.bfloat16)
    k_nope = jnp.transpose(k_nope, (0, 2, 1, 3))
    v = jnp.transpose(v, (0, 2, 1, 3))

    # --- flash-style attention (head axis folded into the block, lane-dense output) ---
    out = mla_attention(q_nope, q_rope, k_nope, k_rope, v, causal=causal)  # (B, N, H*Dv)

    # --- output projection (Pallas tiled matmul) ---
    out = tiled_linear(out.reshape(B * N, H * Dv), params.w_out_t, out_dtype=jnp.float32)
    return out.reshape(B, N, D)


if __name__ == "__main__":
    key = jax.random.PRNGKey(0)
    k_param, k_x = jax.random.split(key)

    # Module defaults (dim=512, n_head=8, kv_lora_rank=128, qk 32+16, v 32), small B/N.
    B, N = 2, 16
    params = MLAParams(k_param, dim=512, n_head=8, kv_lora_rank=128,
                       qk_nope_head_dim=32, qk_rope_head_dim=16, v_head_dim=32)

    x = jax.random.normal(k_x, (B, N, params.dim), jnp.float32)
    rope_cos, rope_sin = make_rope(N, params.qk_rope_head_dim, start_pos=0)

    out = mla_forward(params, x, rope_cos, rope_sin, causal=True)
    jax.block_until_ready(out)
    assert out.shape == (B, N, params.dim)
    assert bool(jnp.all(jnp.isfinite(out)))
    print("KERNEL_OK")
</pallas_src>

<mosaic_0001>
module attributes {stable_mosaic.version = 11 : i64} {
  func.func @_matmul_kernel(%arg0: i32, %arg1: i32, %arg2: i32, %arg3: memref<32x512xbf16, #tpu.memory_space<vmem>>, %arg4: memref<512x528xbf16, #tpu.memory_space<vmem>>, %arg5: memref<32x528xbf16, #tpu.memory_space<vmem>>, %arg6: memref<32x528xf32, #tpu.memory_space<vmem>>) attributes {dimension_semantics = [#tpu.dimension_semantics<parallel>, #tpu.dimension_semantics<parallel>, #tpu.dimension_semantics<arbitrary>], iteration_bounds = array<i64: 1, 1, 1>, scalar_prefetch = 0 : i64, scratch_operands = 1 : i64, tpu.core_type = #tpu.core_type<tc>, window_params = [{transform_indices = @transform_0, window_bounds = array<i64: 32, 512>}, {transform_indices = @transform_1, window_bounds = array<i64: 512, 528>}, {transform_indices = @transform_2, window_bounds = array<i64: 32, 528>}]} {
    %c0_i32 = arith.constant 0 : i32
    %0 = arith.cmpi eq, %arg2, %c0_i32 : i32
    %1 = arith.extui %0 : i1 to i32
    %c0_i32_0 = arith.constant 0 : i32
    %2 = arith.cmpi ne, %1, %c0_i32_0 : i32
    scf.if %2 {
      %cst_10 = arith.constant 0.000000e+00 : f32
      %12 = vector.broadcast %cst_10 : f32 to vector<32x528xf32>
      %c0_11 = arith.constant 0 : index
      %c0_12 = arith.constant 0 : index
      %13 = vector.load %arg6[%c0_11, %c0_12] : memref<32x528xf32, #tpu.memory_space<vmem>>, vector<32x528xf32>
      tpu.vector_store %arg6[%c0_11, %c0_12], %12 {strides = array<i32>} : memref<32x528xf32, #tpu.memory_space<vmem>>, vector<32x528xf32>,
    } else {
    }
    %c0 = arith.constant 0 : index
    %c0_1 = arith.constant 0 : index
    %3 = vector.load %arg6[%c0, %c0_1] : memref<32x528xf32, #tpu.memory_space<vmem>>, vector<32x528xf32>
    %c0_2 = arith.constant 0 : index
    %c0_3 = arith.constant 0 : index
    %4 = vector.load %arg3[%c0_2, %c0_3] : memref<32x512xbf16, #tpu.memory_space<vmem>>, vector<32x512xbf16>
    %c0_4 = arith.constant 0 : index
    %c0_5 = arith.constant 0 : index
    %5 = vector.load %arg4[%c0_4, %c0_5] : memref<512x528xbf16, #tpu.memory_space<vmem>>, vector<512x528xbf16>
    %cst = arith.constant dense<0.000000e+00> : vector<32x528xf32>
    %6 = tpu.matmul %4, %5, %cst {dimension_numbers = #tpu.dot_dimension_numbers<[1], [0], [0], [1], [0, 0, 1, 1], [], []>} : vector<32x512xbf16>, vector<512x528xbf16>, vector<32x528xf32> -> vector<32x528xf32>
    %7 = arith.addf %3, %6 : vector<32x528xf32>
    %c0_6 = arith.constant 0 : index
    %c0_7 = arith.constant 0 : index
    %8 = vector.load %arg6[%c0_6, %c0_7] : memref<32x528xf32, #tpu.memory_space<vmem>>, vector<32x528xf32>
    tpu.vector_store %arg6[%c0_6, %c0_7], %7 {strides = array<i32>} : memref<32x528xf32, #tpu.memory_space<vmem>>, vector<32x528xf32>,
    %c0_i32_8 = arith.constant 0 : i32
    %9 = arith.cmpi eq, %arg2, %c0_i32_8 : i32
    %10 = arith.extui %9 : i1 to i32
    %c0_i32_9 = arith.constant 0 : i32
    %11 = arith.cmpi ne, %10, %c0_i32_9 : i32
    scf.if %11 {
      %c0_10 = arith.constant 0 : index
      %c0_11 = arith.constant 0 : index
      %12 = vector.load %arg6[%c0_10, %c0_11] : memref<32x528xf32, #tpu.memory_space<vmem>>, vector<32x528xf32>
      %13 = arith.truncf %12 : vector<32x528xf32> to vector<32x528xbf16>
      %c0_12 = arith.constant 0 : index
      %c0_13 = arith.constant 0 : index
      %14 = vector.load %arg5[%c0_12, %c0_13] : memref<32x528xbf16, #tpu.memory_space<vmem>>, vector<32x528xbf16>
      tpu.vector_store %arg5[%c0_12, %c0_13], %13 {strides = array<i32>} : memref<32x528xbf16, #tpu.memory_space<vmem>>, vector<32x528xbf16>,
    } else {
    }
    return
  }
  func.func @transform_0(%arg0: i32, %arg1: i32, %arg2: i32) -> (i32, i32) {
    %c0_i32 = arith.constant 0 : i32
    return %arg0, %arg2 : i32, i32
  }
  func.func @transform_1(%arg0: i32, %arg1: i32, %arg2: i32) -> (i32, i32) {
    %c0_i32 = arith.constant 0 : i32
    return %arg2, %arg1 : i32, i32
  }
  func.func @transform_2(%arg0: i32, %arg1: i32, %arg2: i32) -> (i32, i32) {
    %c0_i32 = arith.constant 0 : i32
    return %arg0, %arg1 : i32, i32
  }
}

</mosaic_0001>

<llo_original>
// kernel: tpu_custom_call.1
$region0: #{tpu_custom_call.1}
  #allocation0 [shape = 'u32[]', space=smem, size = 0x4, offset = 0x4, fixed_abs, tag = 'smem constant byte address 0x4 - core index']
  #allocation1 [shape = 'u32[144,128]{1,0:T(1,128)}', space=vmem, size = 0x12000, scoped, tag = 'internal scratch']
  #allocation2 [shape = 'f32[32,528]{1,0:T(8,128)}', space=vmem, size = 0x14000, scoped, tag = 'scratch operand']
  %s0 = inlined_call_operand.vmem [shape: bf16[32,512], index: 0, kind: input, shape index: {}]
  %s1 = inlined_call_operand.vmem [shape: bf16[512,528], index: 1, kind: input, shape index: {}]
  %s2 = inlined_call_operand.hbm [shape: bf16[32,528], index: 2, kind: output, shape index: {}]
  %s3 = sld [smem:[#allocation0]]
  $region26: #{tpu_custom_call.1} parent=0
    _
  %s5 = ssub.s32 1, %s3
  %s6 = scalar_select 0, %s5, %s3
  $region1: #{tpu_custom_call.1} parent=0
    #allocation3 [shape = 'u8[40960]{0}', space=vmem, size = 0xa000, scoped, tag = 'output window, operand 0, single buffered']
    #allocation4 [shape = 's32[1]{0}', space=sflag, size = 0x4, scoped, tag = 'scoped memory for tpu_custom_call.1']
    %7 = vsyncpa [#allocation4], 0
    // Predicated region
    $region2: #{tpu_custom_call.1} parent=1 // pred_check
      _
    $region3: #{tpu_custom_call.1} parent=1 // pred_check_branch
      %9 = sbr.rel (0) target = $region5
    $region4: #{tpu_custom_call.1} parent=1 // pred_region
      _
    $region5: #{tpu_custom_call.1} parent=1 // pred_fallthru
      _
    // Predicated region
    $region6: #{tpu_custom_call.1} parent=1 // pred_check
      _
    $region7: #{tpu_custom_call.1} parent=1 // pred_check_branch
      %11 = sbr.rel (0) target = $region9
    $region8: #{tpu_custom_call.1} parent=1 // pred_region
      _
    $region9: #{tpu_custom_call.1} parent=1 // pred_fallthru
      _
    %p13 = scmp.eq.s32.totalorder 0, 0
    // Predicated region
    $region10: #{tpu_custom_call.1} parent=1 // pred_check
      %p14 = pneg %p13
    $region11: #{tpu_custom_call.1} parent=1 // pred_check_branch
      %16 = sbr.rel (%p14) target = $region13
    $region12: #{tpu_custom_call.1} parent=1 // pred_region
      %17 = vst [vmem:[#allocation2] sm:$0xff] 0.0
      %18 = vst [vmem:[#allocation2 + $0x8] sm:$0xff] 0.0
      %19 = vst [vmem:[#allocation2 + $0x10] sm:$0xff] 0.0
      %20 = vst [vmem:[#allocation2 + $0x18] sm:$0xff] 0.0
      %vm21 = vcmask 130048
      %22 = vst.msk [vmem:[#allocation2 + $0x20] sm:$0xff] %vm21, 0.0
      %23 = vst [vmem:[#allocation2 + $0x28] sm:$0xff] 0.0
      %24 = vst [vmem:[#allocation2 + $0x30] sm:$0xff] 0.0
      %25 = vst [vmem:[#allocation2 + $0x38] sm:$0xff] 0.0
      %26 = vst [vmem:[#allocation2 + $0x40] sm:$0xff] 0.0
      %27 = vst.msk [vmem:[#allocation2 + $0x48] sm:$0xff] %vm21, 0.0
      %28 = vst [vmem:[#allocation2 + $0x50] sm:$0xff] 0.0
      %29 = vst [vmem:[#allocation2 + $0x58] sm:$0xff] 0.0
      %30 = vst [vmem:[#allocation2 + $0x60] sm:$0xff] 0.0
      %31 = vst [vmem:[#allocation2 + $0x68] sm:$0xff] 0.0
      %32 = vst.msk [vmem:[#allocation2 + $0x70] sm:$0xff] %vm21, 0.0
      %33 = vst [vmem:[#allocation2 + $0x78] sm:$0xff] 0.0
      %34 = vst [vmem:[#allocation2 + $0x80] sm:$0xff] 0.0
      %35 = vst [vmem:[#allocation2 + $0x88] sm:$0xff] 0.0
      %36 = vst [vmem:[#allocation2 + $0x90] sm:$0xff] 0.0
      %37 = vst.msk [vmem:[#allocation2 + $0x98] sm:$0xff] %vm21, 0.0
    $region13: #{tpu_custom_call.1} parent=1 // pred_fallthru
      _
    %v38 = vld [vmem:[#allocation2] sm:$0xff]
    %v39 = vld [vmem:[#allocation2 + $0x8] sm:$0xff]
    %v40 = vld [vmem:[#allocation2 + $0x10] sm:$0xff]
    %v41 = vld [vmem:[#allocation2 + $0x18] sm:$0xff]
    %v42 = vld [vmem:[#allocation2 + $0x20] sm:$0xff]
    %v43 = vld [vmem:[#allocation2 + $0x28] sm:$0xff]
    %v44 = vld [vmem:[#allocation2 + $0x30] sm:$0xff]
    %v45 = vld [vmem:[#allocation2 + $0x38] sm:$0xff]
    %v46 = vld [vmem:[#allocation2 + $0x40] sm:$0xff]
    %v47 = vld [vmem:[#allocation2 + $0x48] sm:$0xff]
    %v48 = vld [vmem:[#allocation2 + $0x50] sm:$0xff]
    %v49 = vld [vmem:[#allocation2 + $0x58] sm:$0xff]
    %v50 = vld [vmem:[#allocation2 + $0x60] sm:$0xff]
    %v51 = vld [vmem:[#allocation2 + $0x68] sm:$0xff]
    %v52 = vld [vmem:[#allocation2 + $0x70] sm:$0xff]
    %v53 = vld [vmem:[#allocation2 + $0x78] sm:$0xff]
    %v54 = vld [vmem:[#allocation2 + $0x80] sm:$0xff]
    %v55 = vld [vmem:[#allocation2 + $0x88] sm:$0xff]
    %v56 = vld [vmem:[#allocation2 + $0x90] sm:$0xff]
    %v57 = vld [vmem:[#allocation2 + $0x98] sm:$0xff]
    %v58 = vld [vmem:[%s0] sm:$0xff]
    %v59 = vld [vmem:[%s0 + $0x8] sm:$0xff]
    %v60 = vld [vmem:[%s0 + $0x10] sm:$0xff]
    %v61 = vld [vmem:[%s0 + $0x18] sm:$0xff]
    %v62 = vld [vmem:[%s0 + $0x20] sm:$0xff]
    %v63 = vld [vmem:[%s0 + $0x28] sm:$0xff]
    %v64 = vld [vmem:[%s0 + $0x30] sm:$0xff]
    %v65 = vld [vmem:[%s0 + $0x38] sm:$0xff]
    %v66 = vld [vmem:[%s1] sm:$0xff]
    %v67 = vld [vmem:[%s1 + $0x8] sm:$0xff]
    %v68 = vld [vmem:[%s1 + $0x10] sm:$0xf]
    %v69 = vld [vmem:[%s1 + $0x14] sm:$0xff]
    %v70 = vld [vmem:[%s1 + $0x1c] sm:$0xff]
    %v71 = vld [vmem:[%s1 + $0x24] sm:$0xf]
    %v72 = vld [vmem:[%s1 + $0x28] sm:$0xff]
    %v73 = vld [vmem:[%s1 + $0x30] sm:$0xff]
    %v74 = vld [vmem:[%s1 + $0x38] sm:$0xf]
    %v75 = vld [vmem:[%s1 + $0x3c] sm:$0xff]
    %v76 = vld [vmem:[%s1 + $0x44] sm:$0xff]
    %v77 = vld [vmem:[%s1 + $0x4c] sm:$0xf]
    %v78 = vld [vmem:[%s1 + $0x50] sm:$0xff]
    %v79 = vld [vmem:[%s1 + $0x58] sm:$0xff]
    %v80 = vld [vmem:[%s1 + $0x60] sm:$0xf]
    %v81 = vld [vmem:[%s1 + $0x64] sm:$0xff]
    %v82 = vld [vmem:[%s1 + $0x6c] sm:$0xff]
    %v83 = vld [vmem:[%s1 + $0x74] sm:$0xf]
    %v84 = vld [vmem:[%s1 + $0x78] sm:$0xff]
    %v85 = vld [vmem:[%s1 + $0x80] sm:$0xff]
    %v86 = vld [vmem:[%s1 + $0x88] sm:$0xf]
    %v87 = vld [vmem:[%s1 + $0x8c] sm:$0xff]
    %v88 = vld [vmem:[%s1 + $0x94] sm:$0xff]
    %v89 = vld [vmem:[%s1 + $0x9c] sm:$0xf]
    %v90 = vld [vmem:[%s1 + $0xa0] sm:$0xff]
    %v91 = vld [vmem:[%s1 + $0xa8] sm:$0xff]
    %v92 = vld [vmem:[%s1 + $0xb0] sm:$0xf]
    %v93 = vld [vmem:[%s1 + $0xb4] sm:$0xff]
    %v94 = vld [vmem:[%s1 + $0xbc] sm:$0xff]
    %v95 = vld [vmem:[%s1 + $0xc4] sm:$0xf]
    %v96 = vld [vmem:[%s1 + $0xc8] sm:$0xff]
    %v97 = vld [vmem:[%s1 + $0xd0] sm:$0xff]
    %v98 = vld [vmem:[%s1 + $0xd8] sm:$0xf]
    %v99 = vld [vmem:[%s1 + $0xdc] sm:$0xff]
    %v100 = vld [vmem:[%s1 + $0xe4] sm:$0xff]
    %v101 = vld [vmem:[%s1 + $0xec] sm:$0xf]
    %v102 = vld [vmem:[%s1 + $0xf0] sm:$0xff]
    %v103 = vld [vmem:[%s1 + $0xf8] sm:$0xff]
    %v104 = vld [vmem:[%s1 + $0x100] sm:$0xf]
    %v105 = vld [vmem:[%s1 + $0x104] sm:$0xff]
    %v106 = vld [vmem:[%s1 + $0x10c] sm:$0xff]
    %v107 = vld [vmem:[%s1 + $0x114] sm:$0xf]
    %v108 = vld [vmem:[%s1 + $0x118] sm:$0xff]
    %v109 = vld [vmem:[%s1 + $0x120] sm:$0xff]
    %v110 = vld [vmem:[%s1 + $0x128] sm:$0xf]
    %v111 = vld [vmem:[%s1 + $0x12c] sm:$0xff]
    %v112 = vld [vmem:[%s1 + $0x134] sm:$0xff]
    %v113 = vld [vmem:[%s1 + $0x13c] sm:$0xf]
    %v114 = vld [vmem:[%s1 + $0x140] sm:$0xff]
    %v115 = vld [vmem:[%s1 + $0x148] sm:$0xff]
    %v116 = vld [vmem:[%s1 + $0x150] sm:$0xf]
    %v117 = vld [vmem:[%s1 + $0x154] sm:$0xff]
    %v118 = vld [vmem:[%s1 + $0x15c] sm:$0xff]
    %v119 = vld [vmem:[%s1 + $0x164] sm:$0xf]
    %v120 = vld [vmem:[%s1 + $0x168] sm:$0xff]
    %v121 = vld [vmem:[%s1 + $0x170] sm:$0xff]
    %v122 = vld [vmem:[%s1 + $0x178] sm:$0xf]
    %v123 = vld [vmem:[%s1 + $0x17c] sm:$0xff]
    %v124 = vld [vmem:[%s1 + $0x184] sm:$0xff]
    %v125 = vld [vmem:[%s1 + $0x18c] sm:$0xf]
    %v126 = vld [vmem:[%s1 + $0x190] sm:$0xff]
    %v127 = vld [vmem:[%s1 + $0x198] sm:$0xff]
    %v128 = vld [vmem:[%s1 + $0x1a0] sm:$0xf]
    %v129 = vld [vmem:[%s1 + $0x1a4] sm:$0xff]
    %v130 = vld [vmem:[%s1 + $0x1ac] sm:$0xff]
    %v131 = vld [vmem:[%s1 + $0x1b4] sm:$0xf]
    %v132 = vld [vmem:[%s1 + $0x1b8] sm:$0xff]
    %v133 = vld [vmem:[%s1 + $0x1c0] sm:$0xff]
    %v134 = vld [vmem:[%s1 + $0x1c8] sm:$0xf]
    %v135 = vld [vmem:[%s1 + $0x1cc] sm:$0xff]
    %v136 = vld [vmem:[%s1 + $0x1d4] sm:$0xff]
    %v137 = vld [vmem:[%s1 + $0x1dc] sm:$0xf]
    %v138 = vld [vmem:[%s1 + $0x1e0] sm:$0xff]
    %v139 = vld [vmem:[%s1 + $0x1e8] sm:$0xff]
    %v140 = vld [vmem:[%s1 + $0x1f0] sm:$0xf]
    %v141 = vld [vmem:[%s1 + $0x1f4] sm:$0xff]
    %v142 = vld [vmem:[%s1 + $0x1fc] sm:$0xff]
    %v143 = vld [vmem:[%s1 + $0x204] sm:$0xf]
    %v144 = vld [vmem:[%s1 + $0x208] sm:$0xff]
    %v145 = vld [vmem:[%s1 + $0x210] sm:$0xff]
    %v146 = vld [vmem:[%s1 + $0x218] sm:$0xf]
    %v147 = vld [vmem:[%s1 + $0x21c] sm:$0xff]
    %v148 = vld [vmem:[%s1 + $0x224] sm:$0xff]
    %v149 = vld [vmem:[%s1 + $0x22c] sm:$0xf]
    %v150 = vld [vmem:[%s1 + $0x230] sm:$0xff]
    %v151 = vld [vmem:[%s1 + $0x238] sm:$0xff]
    %v152 = vld [vmem:[%s1 + $0x240] sm:$0xf]
    %v153 = vld [vmem:[%s1 + $0x244] sm:$0xff]
    %v154 = vld [vmem:[%s1 + $0x24c] sm:$0xff]
    %v155 = vld [vmem:[%s1 + $0x254] sm:$0xf]
    %v156 = vld [vmem:[%s1 + $0x258] sm:$0xff]
    %v157 = vld [vmem:[%s1 + $0x260] sm:$0xff]
    %v158 = vld [vmem:[%s1 + $0x268] sm:$0xf]
    %v159 = vld [vmem:[%s1 + $0x26c] sm:$0xff]
    %v160 = vld [vmem:[%s1 + $0x274] sm:$0xff]
    %v161 = vld [vmem:[%s1 + $0x27c] sm:$0xf]
    %v162 = vld [vmem:[%s1 + $0x280] sm:$0xff]
    %v163 = vld [vmem:[%s1 + $0x288] sm:$0xff]
    %v164 = vld [vmem:[%s1 + $0x290] sm:$0xf]
    %v165 = vld [vmem:[%s1 + $0x294] sm:$0xff]
    %v166 = vld [vmem:[%s1 + $0x29c] sm:$0xff]
    %v167 = vld [vmem:[%s1 + $0x2a4] sm:$0xf]
    %v168 = vld [vmem:[%s1 + $0x2a8] sm:$0xff]
    %v169 = vld [vmem:[%s1 + $0x2b0] sm:$0xff]
    %v170 = vld [vmem:[%s1 + $0x2b8] sm:$0xf]
    %v171 = vld [vmem:[%s1 + $0x2bc] sm:$0xff]
    %v172 = vld [vmem:[%s1 + $0x2c4] sm:$0xff]
    %v173 = vld [vmem:[%s1 + $0x2cc] sm:$0xf]
    %v174 = vld [vmem:[%s1 + $0x2d0] sm:$0xff]
    %v175 = vld [vmem:[%s1 + $0x2d8] sm:$0xff]
    %v176 = vld [vmem:[%s1 + $0x2e0] sm:$0xf]
    %v177 = vld [vmem:[%s1 + $0x2e4] sm:$0xff]
    %v178 = vld [vmem:[%s1 + $0x2ec] sm:$0xff]
    %v179 = vld [vmem:[%s1 + $0x2f4] sm:$0xf]
    %v180 = vld [vmem:[%s1 + $0x2f8] sm:$0xff]
    %v181 = vld [vmem:[%s1 + $0x300] sm:$0xff]
    %v182 = vld [vmem:[%s1 + $0x308] sm:$0xf]
    %v183 = vld [vmem:[%s1 + $0x30c] sm:$0xff]
    %v184 = vld [vmem:[%s1 + $0x314] sm:$0xff]
    %v185 = vld [vmem:[%s1 + $0x31c] sm:$0xf]
    %v186 = vld [vmem:[%s1 + $0x320] sm:$0xff]
    %v187 = vld [vmem:[%s1 + $0x328] sm:$0xff]
    %v188 = vld [vmem:[%s1 + $0x330] sm:$0xf]
    %v189 = vld [vmem:[%s1 + $0x334] sm:$0xff]
    %v190 = vld [vmem:[%s1 + $0x33c] sm:$0xff]
    %v191 = vld [vmem:[%s1 + $0x344] sm:$0xf]
    %v192 = vld [vmem:[%s1 + $0x348] sm:$0xff]
    %v193 = vld [vmem:[%s1 + $0x350] sm:$0xff]
    %v194 = vld [vmem:[%s1 + $0x358] sm:$0xf]
    %v195 = vld [vmem:[%s1 + $0x35c] sm:$0xff]
    %v196 = vld [vmem:[%s1 + $0x364] sm:$0xff]
    %v197 = vld [vmem:[%s1 + $0x36c] sm:$0xf]
    %v198 = vld [vmem:[%s1 + $0x370] sm:$0xff]
    %v199 = vld [vmem:[%s1 + $0x378] sm:$0xff]
    %v200 = vld [vmem:[%s1 + $0x380] sm:$0xf]
    %v201 = vld [vmem:[%s1 + $0x384] sm:$0xff]
    %v202 = vld [vmem:[%s1 + $0x38c] sm:$0xff]
    %v203 = vld [vmem:[%s1 + $0x394] sm:$0xf]
    %v204 = vld [vmem:[%s1 + $0x398] sm:$0xff]
    %v205 = vld [vmem:[%s1 + $0x3a0] sm:$0xff]
    %v206 = vld [vmem:[%s1 + $0x3a8] sm:$0xf]
    %v207 = vld [vmem:[%s1 + $0x3ac] sm:$0xff]
    %v208 = vld [vmem:[%s1 + $0x3b4] sm:$0xff]
    %v209 = vld [vmem:[%s1 + $0x3bc] sm:$0xf]
    %v210 = vld [vmem:[%s1 + $0x3c0] sm:$0xff]
    %v211 = vld [vmem:[%s1 + $0x3c8] sm:$0xff]
    %v212 = vld [vmem:[%s1 + $0x3d0] sm:$0xf]
    %v213 = vld [vmem:[%s1 + $0x3d4] sm:$0xff]
    %v214 = vld [vmem:[%s1 + $0x3dc] sm:$0xff]
    %v215 = vld [vmem:[%s1 + $0x3e4] sm:$0xf]
    %v216 = vld [vmem:[%s1 + $0x3e8] sm:$0xff]
    %v217 = vld [vmem:[%s1 + $0x3f0] sm:$0xff]
    %v218 = vld [vmem:[%s1 + $0x3f8] sm:$0xf]
    %v219 = vld [vmem:[%s1 + $0x3fc] sm:$0xff]
    %v220 = vld [vmem:[%s1 + $0x404] sm:$0xff]
    %v221 = vld [vmem:[%s1 + $0x40c] sm:$0xf]
    %v222 = vld [vmem:[%s1 + $0x410] sm:$0xff]
    %v223 = vld [vmem:[%s1 + $0x418] sm:$0xff]
    %v224 = vld [vmem:[%s1 + $0x420] sm:$0xf]
    %v225 = vld [vmem:[%s1 + $0x424] sm:$0xff]
    %v226 = vld [vmem:[%s1 + $0x42c] sm:$0xff]
    %v227 = vld [vmem:[%s1 + $0x434] sm:$0xf]
    %v228 = vld [vmem:[%s1 + $0x438] sm:$0xff]
    %v229 = vld [vmem:[%s1 + $0x440] sm:$0xff]
    %v230 = vld [vmem:[%s1 + $0x448] sm:$0xf]
    %v231 = vld [vmem:[%s1 + $0x44c] sm:$0xff]
    %v232 = vld [vmem:[%s1 + $0x454] sm:$0xff]
    %v233 = vld [vmem:[%s1 + $0x45c] sm:$0xf]
    %v234 = vld [vmem:[%s1 + $0x460] sm:$0xff]
    %v235 = vld [vmem:[%s1 + $0x468] sm:$0xff]
    %v236 = vld [vmem:[%s1 + $0x470] sm:$0xf]
    %v237 = vld [vmem:[%s1 + $0x474] sm:$0xff]
    %v238 = vld [vmem:[%s1 + $0x47c] sm:$0xff]
    %v239 = vld [vmem:[%s1 + $0x484] sm:$0xf]
    %v240 = vld [vmem:[%s1 + $0x488] sm:$0xff]
    %v241 = vld [vmem:[%s1 + $0x490] sm:$0xff]
    %v242 = vld [vmem:[%s1 + $0x498] sm:$0xf]
    %v243 = vld [vmem:[%s1 + $0x49c] sm:$0xff]
    %v244 = vld [vmem:[%s1 + $0x4a4] sm:$0xff]
    %v245 = vld [vmem:[%s1 + $0x4ac] sm:$0xf]
    %v246 = vld [vmem:[%s1 + $0x4b0] sm:$0xff]
    %v247 = vld [vmem:[%s1 + $0x4b8] sm:$0xff]
    %v248 = vld [vmem:[%s1 + $0x4c0] sm:$0xf]
    %v249 = vld [vmem:[%s1 + $0x4c4] sm:$0xff]
    %v250 = vld [vmem:[%s1 + $0x4cc] sm:$0xff]
    %v251 = vld [vmem:[%s1 + $0x4d4] sm:$0xf]
    %v252 = vld [vmem:[%s1 + $0x4d8] sm:$0xff]
    %v253 = vld [vmem:[%s1 + $0x4e0] sm:$0xff]
    %v254 = vld [vmem:[%s1 + $0x4e8] sm:$0xf]
    %v255 = vld [vmem:[%s1 + $0x4ec] sm:$0xff]
    %v256 = vld [vmem:[%s1 + $0x4f4] sm:$0xff]
    %v257 = vld [vmem:[%s1 + $0x4fc] sm:$0xf]
    %v266 = vunpack.c.l.b16 %v58
    %v267 = vunpack.c.h.b16 %v58
    %v268 = vunpack.c.l.b16 %v59
    %v269 = vunpack.c.h.b16 %v59
    %v270 = vunpack.c.l.b16 %v60
    %v271 = vunpack.c.h.b16 %v60
    %v272 = vunpack.c.l.b16 %v61
    %v273 = vunpack.c.h.b16 %v61
    %v274 = vunpack.c.l.b16 %v62
    %v275 = vunpack.c.h.b16 %v62
    %v276 = vunpack.c.l.b16 %v63
    %v277 = vunpack.c.h.b16 %v63
    %v278 = vunpack.c.l.b16 %v64
    %v279 = vunpack.c.h.b16 %v64
    %v280 = vunpack.c.l.b16 %v65
    %v281 = vunpack.c.h.b16 %v65
    %v282 = vpack.c.b16 %v270, %v266
    %v283 = vpack.c.b16 %v271, %v267
    %v284 = vpack.c.b16 %v272, %v268
    %v285 = vpack.c.b16 %v273, %v269
    %v286 = vpack.c.b16 %v278, %v274
    %v287 = vpack.c.b16 %v279, %v275
    %v288 = vpack.c.b16 %v280, %v276
    %v289 = vpack.c.b16 %v281, %v277
    %v490 = vunpack.c.l.b16 %v66
    %v491 = vunpack.c.h.b16 %v66
    %v492 = vunpack.c.l.b16 %v67
    %v493 = vunpack.c.h.b16 %v67
    %v494 = vunpack.c.l.b16 %v68
    %v495 = vunpack.c.l.b16 %v69
    %v496 = vunpack.c.h.b16 %v69
    %v497 = vunpack.c.l.b16 %v70
    %v498 = vunpack.c.h.b16 %v70
    %v499 = vunpack.c.l.b16 %v71
    %v500 = vunpack.c.l.b16 %v72
    %v501 = vunpack.c.h.b16 %v72
    %v502 = vunpack.c.l.b16 %v73
    %v503 = vunpack.c.h.b16 %v73
    %v504 = vunpack.c.l.b16 %v74
    %v505 = vunpack.c.l.b16 %v75
    %v506 = vunpack.c.h.b16 %v75
    %v507 = vunpack.c.l.b16 %v76
    %v508 = vunpack.c.h.b16 %v76
    %v509 = vunpack.c.l.b16 %v77
    %v510 = vunpack.c.l.b16 %v78
    %v511 = vunpack.c.h.b16 %v78
    %v512 = vunpack.c.l.b16 %v79
    %v513 = vunpack.c.h.b16 %v79
    %v514 = vunpack.c.l.b16 %v80
    %v515 = vunpack.c.l.b16 %v81
    %v516 = vunpack.c.h.b16 %v81
    %v517 = vunpack.c.l.b16 %v82
    %v518 = vunpack.c.h.b16 %v82
    %v519 = vunpack.c.l.b16 %v83
    %v520 = vunpack.c.l.b16 %v84
    %v521 = vunpack.c.h.b16 %v84
    %v522 = vunpack.c.l.b16 %v85
    %v523 = vunpack.c.h.b16 %v85
    %v524 = vunpack.c.l.b16 %v86
    %v525 = vunpack.c.l.b16 %v87
    %v526 = vunpack.c.h.b16 %v87
    %v527 = vunpack.c.l.b16 %v88
    %v528 = vunpack.c.h.b16 %v88
    %v529 = vunpack.c.l.b16 %v89
    %v530 = vunpack.c.l.b16 %v90
    %v531 = vunpack.c.h.b16 %v90
    %v532 = vunpack.c.l.b16 %v91
    %v533 = vunpack.c.h.b16 %v91
    %v534 = vunpack.c.l.b16 %v92
    %v535 = vunpack.c.l.b16 %v93
    %v536 = vunpack.c.h.b16 %v93
    %v537 = vunpack.c.l.b16 %v94
    %v538 = vunpack.c.h.b16 %v94
    %v539 = vunpack.c.l.b16 %v95
    %v540 = vunpack.c.l.b16 %v96
    %v541 = vunpack.c.h.b16 %v96
    %v542 = vunpack.c.l.b16 %v97
    %v543 = vunpack.c.h.b16 %v97
    %v544 = vunpack.c.l.b16 %v98
    %v545 = vunpack.c.l.b16 %v99
    %v546 = vunpack.c.h.b16 %v99
    %v547 = vunpack.c.l.b16 %v100
    %v548 = vunpack.c.h.b16 %v100
    %v549 = vunpack.c.l.b16 %v101
    %v550 = vunpack.c.l.b16 %v102
    %v551 = vunpack.c.h.b16 %v102
    %v552 = vunpack.c.l.b16 %v103
    %v553 = vunpack.c.h.b16 %v103
    %v554 = vunpack.c.l.b16 %v104
    %v555 = vunpack.c.l.b16 %v105
    %v556 = vunpack.c.h.b16 %v105
    %v557 = vunpack.c.l.b16 %v106
    %v558 = vunpack.c.h.b16 %v106
    %v559 = vunpack.c.l.b16 %v107
    %v560 = vunpack.c.l.b16 %v108
    %v561 = vunpack.c.h.b16 %v108
    %v562 = vunpack.c.l.b16 %v109
    %v563 = vunpack.c.h.b16 %v109
    %v564 = vunpack.c.l.b16 %v110
    %v565 = vunpack.c.l.b16 %v111
    %v566 = vunpack.c.h.b16 %v111
    %v567 = vunpack.c.l.b16 %v112
    %v568 = vunpack.c.h.b16 %v112
    %v569 = vunpack.c.l.b16 %v113
    %v570 = vunpack.c.l.b16 %v114
    %v571 = vunpack.c.h.b16 %v114
    %v572 = vunpack.c.l.b16 %v115
    %v573 = vunpack.c.h.b16 %v115
    %v574 = vunpack.c.l.b16 %v116
    %v575 = vunpack.c.l.b16 %v117
    %v576 = vunpack.c.h.b16 %v117
    %v577 = vunpack.c.l.b16 %v118
    %v578 = vunpack.c.h.b16 %v118
    %v579 = vunpack.c.l.b16 %v119
    %v580 = vunpack.c.l.b16 %v120
    %v581 = vunpack.c.h.b16 %v120
    %v582 = vunpack.c.l.b16 %v121
    %v583 = vunpack.c.h.b16 %v121
    %v584 = vunpack.c.l.b16 %v122
    %v585 = vunpack.c.l.b16 %v123
    %v586 = vunpack.c.h.b16 %v123
    %v587 = vunpack.c.l.b16 %v124
    %v588 = vunpack.c.h.b16 %v124
    %v589 = vunpack.c.l.b16 %v125
    %v590 = vunpack.c.l.b16 %v126
    %v591 = vunpack.c.h.b16 %v126
    %v592 = vunpack.c.l.b16 %v127
    %v593 = vunpack.c.h.b16 %v127
    %v594 = vunpack.c.l.b16 %v128
    %v595 = vunpack.c.l.b16 %v129
    %v596 = vunpack.c.h.b16 %v129
    %v597 = vunpack.c.l.b16 %v130
    %v598 = vunpack.c.h.b16 %v130
    %v599 = vunpack.c.l.b16 %v131
    %v600 = vunpack.c.l.b16 %v132
    %v601 = vunpack.c.h.b16 %v132
    %v602 = vunpack.c.l.b16 %v133
    %v603 = vunpack.c.h.b16 %v133
    %v604 = vunpack.c.l.b16 %v134
    %v605 = vunpack.c.l.b16 %v135
    %v606 = vunpack.c.h.b16 %v135
    %v607 = vunpack.c.l.b16 %v136
    %v608 = vunpack.c.h.b16 %v136
    %v609 = vunpack.c.l.b16 %v137
    %v610 = vunpack.c.l.b16 %v138
    %v611 = vunpack.c.h.b16 %v138
    %v612 = vunpack.c.l.b16 %v139
    %v613 = vunpack.c.h.b16 %v139
    %v614 = vunpack.c.l.b16 %v140
    %v615 = vunpack.c.l.b16 %v141
    %v616 = vunpack.c.h.b16 %v141
    %v617 = vunpack.c.l.b16 %v142
    %v618 = vunpack.c.h.b16 %v142
    %v619 = vunpack.c.l.b16 %v143
    %v620 = vunpack.c.l.b16 %v144
    %v621 = vunpack.c.h.b16 %v144
    %v622 = vunpack.c.l.b16 %v145
    %v623 = vunpack.c.h.b16 %v145
    %v624 = vunpack.c.l.b16 %v146
    %v625 = vunpack.c.l.b16 %v147
    %v626 = vunpack.c.h.b16 %v147
    %v627 = vunpack.c.l.b16 %v148
    %v628 = vunpack.c.h.b16 %v148
    %v629 = vunpack.c.l.b16 %v149
    %v630 = vunpack.c.l.b16 %v150
    %v631 = vunpack.c.h.b16 %v150
    %v632 = vunpack.c.l.b16 %v151
    %v633 = vunpack.c.h.b16 %v151
    %v634 = vunpack.c.l.b16 %v152
    %v635 = vunpack.c.l.b16 %v153
    %v636 = vunpack.c.h.b16 %v153
    %v637 = vunpack.c.l.b16 %v154
    %v638 = vunpack.c.h.b16 %v154
    %v639 = vunpack.c.l.b16 %v155
    %v640 = vunpack.c.l.b16 %v156
    %v641 = vunpack.c.h.b16 %v156
    %v642 = vunpack.c.l.b16 %v157
    %v643 = vunpack.c.h.b16 %v157
    %v644 = vunpack.c.l.b16 %v158
    %v645 = vunpack.c.l.b16 %v159
    %v646 = vunpack.c.h.b16 %v159
    %v647 = vunpack.c.l.b16 %v160
    %v648 = vunpack.c.h.b16 %v160
    %v649 = vunpack.c.l.b16 %v161
    %v650 = vunpack.c.l.b16 %v162
    %v651 = vunpack.c.h.b16 %v162
    %v652 = vunpack.c.l.b16 %v163
    %v653 = vunpack.c.h.b16 %v163
    %v654 = vunpack.c.l.b16 %v164
    %v655 = vunpack.c.l.b16 %v165
    %v656 = vunpack.c.h.b16 %v165
    %v657 = vunpack.c.l.b16 %v166
    %v658 = vunpack.c.h.b16 %v166
    %v659 = vunpack.c.l.b16 %v167
    %v660 = vunpack.c.l.b16 %v168
    %v661 = vunpack.c.h.b16 %v168
    %v662 = vunpack.c.l.b16 %v169
    %v663 = vunpack.c.h.b16 %v169
    %v664 = vunpack.c.l.b16 %v170
    %v665 = vunpack.c.l.b16 %v171
    %v666 = vunpack.c.h.b16 %v171
    %v667 = vunpack.c.l.b16 %v172
    %v668 = vunpack.c.h.b16 %v172
    %v669 = vunpack.c.l.b16 %v173
    %v670 = vunpack.c.l.b16 %v174
    %v671 = vunpack.c.h.b16 %v174
    %v672 = vunpack.c.l.b16 %v175
    %v673 = vunpack.c.h.b16 %v175
    %v674 = vunpack.c.l.b16 %v176
    %v675 = vunpack.c.l.b16 %v177
    %v676 = vunpack.c.h.b16 %v177
    %v677 = vunpack.c.l.b16 %v178
    %v678 = vunpack.c.h.b16 %v178
    %v679 = vunpack.c.l.b16 %v179
    %v680 = vunpack.c.l.b16 %v180
    %v681 = vunpack.c.h.b16 %v180
    %v682 = vunpack.c.l.b16 %v181
    %v683 = vunpack.c.h.b16 %v181
    %v684 = vunpack.c.l.b16 %v182
    %v685 = vunpack.c.l.b16 %v183
    %v686 = vunpack.c.h.b16 %v183
    %v687 = vunpack.c.l.b16 %v184
    %v688 = vunpack.c.h.b16 %v184
    %v689 = vunpack.c.l.b16 %v185
    %v690 = vunpack.c.l.b16 %v186
    %v691 = vunpack.c.h.b16 %v186
    %v692 = vunpack.c.l.b16 %v187
    %v693 = vunpack.c.h.b16 %v187
    %v694 = vunpack.c.l.b16 %v188
    %v695 = vunpack.c.l.b16 %v189
    %v696 = vunpack.c.h.b16 %v189
    %v697 = vunpack.c.l.b16 %v190
    %v698 = vunpack.c.h.b16 %v190
    %v699 = vunpack.c.l.b16 %v191
    %v700 = vunpack.c.l.b16 %v192
    %v701 = vunpack.c.h.b16 %v192
    %v702 = vunpack.c.l.b16 %v193
    %v703 = vunpack.c.h.b16 %v193
    %v704 = vunpack.c.l.b16 %v194
    %v705 = vunpack.c.l.b16 %v195
    %v706 = vunpack.c.h.b16 %v195
    %v707 = vunpack.c.l.b16 %v196
    %v708 = vunpack.c.h.b16 %v196
    %v709 = vunpack.c.l.b16 %v197
    %v710 = vunpack.c.l.b16 %v198
    %v711 = vunpack.c.h.b16 %v198
    %v712 = vunpack.c.l.b16 %v199
    %v713 = vunpack.c.h.b16 %v199
    %v714 = vunpack.c.l.b16 %v200
    %v715 = vunpack.c.l.b16 %v201
    %v716 = vunpack.c.h.b16 %v201
    %v717 = vunpack.c.l.b16 %v202
    %v718 = vunpack.c.h.b16 %v202
    %v719 = vunpack.c.l.b16 %v203
    %v720 = vunpack.c.l.b16 %v204
    %v721 = vunpack.c.h.b16 %v204
    %v722 = vunpack.c.l.b16 %v205
    %v723 = vunpack.c.h.b16 %v205
    %v724 = vunpack.c.l.b16 %v206
    %v725 = vunpack.c.l.b16 %v207
    %v726 = vunpack.c.h.b16 %v207
    %v727 = vunpack.c.l.b16 %v208
    %v728 = vunpack.c.h.b16 %v208
    %v729 = vunpack.c.l.b16 %v209
    %v730 = vunpack.c.l.b16 %v210
    %v731 = vunpack.c.h.b16 %v210
    %v732 = vunpack.c.l.b16 %v211
    %v733 = vunpack.c.h.b16 %v211
    %v734 = vunpack.c.l.b16 %v212
    %v735 = vunpack.c.l.b16 %v213
    %v736 = vunpack.c.h.b16 %v213
    %v737 = vunpack.c.l.b16 %v214
    %v738 = vunpack.c.h.b16 %v214
    %v739 = vunpack.c.l.b16 %v215
    %v740 = vunpack.c.l.b16 %v216
    %v741 = vunpack.c.h.b16 %v216
    %v742 = vunpack.c.l.b16 %v217
    %v743 = vunpack.c.h.b16 %v217
    %v744 = vunpack.c.l.b16 %v218
    %v745 = vunpack.c.l.b16 %v219
    %v746 = vunpack.c.h.b16 %v219
    %v747 = vunpack.c.l.b16 %v220
    %v748 = vunpack.c.h.b16 %v220
    %v749 = vunpack.c.l.b16 %v221
    %v750 = vunpack.c.l.b16 %v222
    %v751 = vunpack.c.h.b16 %v222
    %v752 = vunpack.c.l.b16 %v223
    %v753 = vunpack.c.h.b16 %v223
    %v754 = vunpack.c.l.b16 %v224
    %v755 = vunpack.c.l.b16 %v225
    %v756 = vunpack.c.h.b16 %v225
    %v757 = vunpack.c.l.b16 %v226
    %v758 = vunpack.c.h.b16 %v226
    %v759 = vunpack.c.l.b16 %v227
    %v760 = vunpack.c.l.b16 %v228
    %v761 = vunpack.c.h.b16 %v228
    %v762 = vunpack.c.l.b16 %v229
    %v763 = vunpack.c.h.b16 %v229
    %v764 = vunpack.c.l.b16 %v230
    %v765 = vunpack.c.l.b16 %v231
    %v766 = vunpack.c.h.b16 %v231
    %v767 = vunpack.c.l.b16 %v232
    %v768 = vunpack.c.h.b16 %v232
    %v769 = vunpack.c.l.b16 %v233
    %v770 = vunpack.c.l.b16 %v234
    %v771 = vunpack.c.h.b16 %v234
    %v772 = vunpack.c.l.b16 %v235
    %v773 = vunpack.c.h.b16 %v235
    %v774 = vunpack.c.l.b16 %v236
    %v775 = vunpack.c.l.b16 %v237
    %v776 = vunpack.c.h.b16 %v237
    %v777 = vunpack.c.l.b16 %v238
    %v778 = vunpack.c.h.b16 %v238
    %v779 = vunpack.c.l.b16 %v239
    %v780 = vunpack.c.l.b16 %v240
    %v781 = vunpack.c.h.b16 %v240
    %v782 = vunpack.c.l.b16 %v241
    %v783 = vunpack.c.h.b16 %v241
    %v784 = vunpack.c.l.b16 %v242
    %v785 = vunpack.c.l.b16 %v243
    %v786 = vunpack.c.h.b16 %v243
    %v787 = vunpack.c.l.b16 %v244
    %v788 = vunpack.c.h.b16 %v244
    %v789 = vunpack.c.l.b16 %v245
    %v790 = vunpack.c.l.b16 %v246
    %v791 = vunpack.c.h.b16 %v246
    %v792 = vunpack.c.l.b16 %v247
    %v793 = vunpack.c.h.b16 %v247
    %v794 = vunpack.c.l.b16 %v248
    %v795 = vunpack.c.l.b16 %v249
    %v796 = vunpack.c.h.b16 %v249
    %v797 = vunpack.c.l.b16 %v250
    %v798 = vunpack.c.h.b16 %v250
    %v799 = vunpack.c.l.b16 %v251
    %v800 = vunpack.c.l.b16 %v252
    %v801 = vunpack.c.h.b16 %v252
    %v802 = vunpack.c.l.b16 %v253
    %v803 = vunpack.c.h.b16 %v253
    %v804 = vunpack.c.l.b16 %v254
    %v805 = vunpack.c.l.b16 %v255
    %v806 = vunpack.c.h.b16 %v255
    %v807 = vunpack.c.l.b16 %v256
    %v808 = vunpack.c.h.b16 %v256
    %v809 = vunpack.c.l.b16 %v257
    %v810 = vpack.c.b16 %v495, %v490
    %v811 = vpack.c.b16 %v496, %v491
    %v812 = vpack.c.b16 %v497, %v492
    %v813 = vpack.c.b16 %v498, %v493
    %v814 = vpack.c.b16 %v499, %v494
    %v815 = vpack.c.b16 %v505, %v500
    %v816 = vpack.c.b16 %v506, %v501
    %v817 = vpack.c.b16 %v507, %v502
    %v818 = vpack.c.b16 %v508, %v503
    %v819 = vpack.c.b16 %v509, %v504
    %v820 = vpack.c.b16 %v515, %v510
    %v821 = vpack.c.b16 %v516, %v511
    %v822 = vpack.c.b16 %v517, %v512
    %v823 = vpack.c.b16 %v518, %v513
    %v824 = vpack.c.b16 %v519, %v514
    %v825 = vpack.c.b16 %v525, %v520
    %v826 = vpack.c.b16 %v526, %v521
    %v827 = vpack.c.b16 %v527, %v522
    %v828 = vpack.c.b16 %v528, %v523
    %v829 = vpack.c.b16 %v529, %v524
    %v830 = vpack.c.b16 %v535, %v530
    %v831 = vpack.c.b16 %v536, %v531
    %v832 = vpack.c.b16 %v537, %v532
    %v833 = vpack.c.b16 %v538, %v533
    %v834 = vpack.c.b16 %v539, %v534
    %v835 = vpack.c.b16 %v545, %v540
    %v836 = vpack.c.b16 %v546, %v541
    %v837 = vpack.c.b16 %v547, %v542
    %v838 = vpack.c.b16 %v548, %v543
    %v839 = vpack.c.b16 %v549, %v544
    %v840 = vpack.c.b16 %v555, %v550
    %v841 = vpack.c.b16 %v556, %v551
    %v842 = vpack.c.b16 %v557, %v552
    %v843 = vpack.c.b16 %v558, %v553
    %v844 = vpack.c.b16 %v559, %v554
    %v845 = vpack.c.b16 %v565, %v560
    %v846 = vpack.c.b16 %v566, %v561
    %v847 = vpack.c.b16 %v567, %v562
    %v848 = vpack.c.b16 %v568, %v563
    %v849 = vpack.c.b16 %v569, %v564
    %v850 = vpack.c.b16 %v575, %v570
    %v851 = vpack.c.b16 %v576, %v571
    %v852 = vpack.c.b16 %v577, %v572
    %v853 = vpack.c.b16 %v578, %v573
    %v854 = vpack.c.b16 %v579, %v574
    %v855 = vpack.c.b16 %v585, %v580
    %v856 = vpack.c.b16 %v586, %v581
    %v857 = vpack.c.b16 %v587, %v582
    %v858 = vpack.c.b16 %v588, %v583
    %v859 = vpack.c.b16 %v589, %v584
    %v860 = vpack.c.b16 %v595, %v590
    %v861 = vpack.c.b16 %v596, %v591
    %v862 = vpack.c.b16 %v597, %v592
    %v863 = vpack.c.b16 %v598, %v593
    %v864 = vpack.c.b16 %v599, %v594
    %v865 = vpack.c.b16 %v605, %v600
    %v866 = vpack.c.b16 %v606, %v601
    %v867 = vpack.c.b16 %v607, %v602
    %v868 = vpack.c.b16 %v608, %v603
    %v869 = vpack.c.b16 %v609, %v604
    %v870 = vpack.c.b16 %v615, %v610
    %v871 = vpack.c.b16 %v616, %v611
    %v872 = vpack.c.b16 %v617, %v612
    %v873 = vpack.c.b16 %v618, %v613
    %v874 = vpack.c.b16 %v619, %v614
    %v875 = vpack.c.b16 %v625, %v620
    %v876 = vpack.c.b16 %v626, %v621
    %v877 = vpack.c.b16 %v627, %v622
    %v878 = vpack.c.b16 %v628, %v623
    %v879 = vpack.c.b16 %v629, %v624
    %v880 = vpack.c.b16 %v635, %v630
    %v881 = vpack.c.b16 %v636, %v631
    %v882 = vpack.c.b16 %v637, %v632
    %v883 = vpack.c.b16 %v638, %v633
    %v884 = vpack.c.b16 %v639, %v634
    %v885 = vpack.c.b16 %v645, %v640
    %v886 = vpack.c.b16 %v646, %v641
    %v887 = vpack.c.b16 %v647, %v642
    %v888 = vpack.c.b16 %v648, %v643
    %v889 = vpack.c.b16 %v649, %v644
    %v890 = vpack.c.b16 %v655, %v650
    %v891 = vpack.c.b16 %v656, %v651
    %v892 = vpack.c.b16 %v657, %v652
    %v893 = vpack.c.b16 %v658, %v653
    %v894 = vpack.c.b16 %v659, %v654
    %v895 = vpack.c.b16 %v665, %v660
    %v896 = vpack.c.b16 %v666, %v661
    %v897 = vpack.c.b16 %v667, %v662
    %v898 = vpack.c.b16 %v668, %v663
    %v899 = vpack.c.b16 %v669, %v664
    %v900 = vpack.c.b16 %v675, %v670
    %v901 = vpack.c.b16 %v676, %v671
    %v902 = vpack.c.b16 %v677, %v672
    %v903 = vpack.c.b16 %v678, %v673
    %v904 = vpack.c.b16 %v679, %v674
    %v905 = vpack.c.b16 %v685, %v680
    %v906 = vpack.c.b16 %v686, %v681
    %v907 = vpack.c.b16 %v687, %v682
    %v908 = vpack.c.b16 %v688, %v683
    %v909 = vpack.c.b16 %v689, %v684
    %v910 = vpack.c.b16 %v695, %v690
    %v911 = vpack.c.b16 %v696, %v691
    %v912 = vpack.c.b16 %v697, %v692
    %v913 = vpack.c.b16 %v698, %v693
    %v914 = vpack.c.b16 %v699, %v694
    %v915 = vpack.c.b16 %v705, %v700
    %v916 = vpack.c.b16 %v706, %v701
    %v917 = vpack.c.b16 %v707, %v702
    %v918 = vpack.c.b16 %v708, %v703
    %v919 = vpack.c.b16 %v709, %v704
    %v920 = vpack.c.b16 %v715, %v710
    %v921 = vpack.c.b16 %v716, %v711
    %v922 = vpack.c.b16 %v717, %v712
    %v923 = vpack.c.b16 %v718, %v713
    %v924 = vpack.c.b16 %v719, %v714
    %v925 = vpack.c.b16 %v725, %v720
    %v926 = vpack.c.b16 %v726, %v721
    %v927 = vpack.c.b16 %v727, %v722
    %v928 = vpack.c.b16 %v728, %v723
    %v929 = vpack.c.b16 %v729, %v724
    %v930 = vpack.c.b16 %v735, %v730
    %v931 = vpack.c.b16 %v736, %v731
    %v932 = vpack.c.b16 %v737, %v732
    %v933 = vpack.c.b16 %v738, %v733
    %v934 = vpack.c.b16 %v739, %v734
    %v935 = vpack.c.b16 %v745, %v740
    %v936 = vpack.c.b16 %v746, %v741
    %v937 = vpack.c.b16 %v747, %v742
    %v938 = vpack.c.b16 %v748, %v743
    %v939 = vpack.c.b16 %v749, %v744
    %v940 = vpack.c.b16 %v755, %v750
    %v941 = vpack.c.b16 %v756, %v751
    %v942 = vpack.c.b16 %v757, %v752
    %v943 = vpack.c.b16 %v758, %v753
    %v944 = vpack.c.b16 %v759, %v754
    %v945 = vpack.c.b16 %v765, %v760
    %v946 = vpack.c.b16 %v766, %v761
    %v947 = vpack.c.b16 %v767, %v762
    %v948 = vpack.c.b16 %v768, %v763
    %v949 = vpack.c.b16 %v769, %v764
    %v950 = vpack.c.b16 %v775, %v770
    %v951 = vpack.c.b16 %v776, %v771
    %v952 = vpack.c.b16 %v777, %v772
    %v953 = vpack.c.b16 %v778, %v773
    %v954 = vpack.c.b16 %v779, %v774
    %v955 = vpack.c.b16 %v785, %v780
    %v956 = vpack.c.b16 %v786, %v781
    %v957 = vpack.c.b16 %v787, %v782
    %v958 = vpack.c.b16 %v788, %v783
    %v959 = vpack.c.b16 %v789, %v784
    %v960 = vpack.c.b16 %v795, %v790
    %v961 = vpack.c.b16 %v796, %v791
    %v962 = vpack.c.b16 %v797, %v792
    %v963 = vpack.c.b16 %v798, %v793
    %v964 = vpack.c.b16 %v799, %v794
    %v965 = vpack.c.b16 %v805, %v800
    %v966 = vpack.c.b16 %v806, %v801
    %v967 = vpack.c.b16 %v807, %v802
    %v968 = vpack.c.b16 %v808, %v803
    %v969 = vpack.c.b16 %v809, %v804
    %1130 = vmatprep.subr.bf16.mxu0 %v846
    %1131 = vmatpush1.bf16.msra.mxu0 %v845
    %1132 = vmatprep.subr.bf16.mxu0 %v841
    %1133 = vmatpush1.bf16.msra.mxu0 %v840
    %1134 = vmatprep.subr.bf16.mxu0 %v836
    %1135 = vmatpush1.bf16.msra.mxu0 %v835
    %1136 = vmatprep.subr.bf16.mxu0 %v831
    %1137 = vmatpush1.bf16.msra.mxu0 %v830
    %1138 = vmatprep.subr.bf16.mxu0 %v826
    %1139 = vmatpush1.bf16.msra.mxu0 %v825
    %1140 = vmatprep.subr.bf16.mxu0 %v821
    %1141 = vmatpush1.bf16.msra.mxu0 %v820
    %1142 = vmatprep.subr.bf16.mxu0 %v816
    %1143 = vmatpush1.bf16.msra.mxu0 %v815
    %1144 = vmatprep.subr.bf16.mxu0 %v811
    %1145 = vmatpush1.bf16.msra.mxu0 %v810
    %1146 = vmatprep.subr.bf16.mxu0 %v886
    %1147 = vmatpush2.bf16.msra.mxu0 %v885
    %1148 = vmatprep.subr.bf16.mxu0 %v881
    %1149 = vmatpush2.bf16.msra.mxu0 %v880
    %1150 = vmatprep.subr.bf16.mxu0 %v876
    %1151 = vmatpush2.bf16.msra.mxu0 %v875
    %1152 = vmatprep.subr.bf16.mxu0 %v871
    %1153 = vmatpush2.bf16.msra.mxu0 %v870
    %1154 = vmatprep.subr.bf16.mxu0 %v866
    %1155 = vmatpush2.bf16.msra.mxu0 %v865
    %1156 = vmatprep.subr.bf16.mxu0 %v861
    %1157 = vmatpush2.bf16.msra.mxu0 %v860
    %1158 = vmatprep.subr.bf16.mxu0 %v856
    %1159 = vmatpush2.bf16.msra.mxu0 %v855
    %1160 = vmatprep.subr.bf16.mxu0 %v851
    %1161 = vmatpush2.bf16.msra.mxu0 %v850
    %1162 = vmatprep.mubr.bf16.mxu0 %v283
    %1163 = vmatmul.mubr.bf16.gmra.mxu0 %v282
    %v1164 = vpop.f32.mrf.mxu0
    %v1165 = vadd.f32 0.0, %v1164
    %v1166 = vpop.f32.mrf.mxu0
    %v1167 = vadd.f32 0.0, %v1166
    %v1168 = vpop.f32.mrf.mxu0
    %v1169 = vadd.f32 0.0, %v1168
    %v1170 = vpop.f32.mrf.mxu0
    %v1171 = vadd.f32 0.0, %v1170
    %1172 = vmatprep.mubr.bf16.mxu0 %v287
    %1173 = vmatmul.mubr.bf16.gmra.mxu0 %v286
    %v1174 = vpop.f32.mrf.mxu0
    %v1175 = vadd.f32 0.0, %v1174
    %v1176 = vpop.f32.mrf.mxu0
    %v1177 = vadd.f32 0.0, %v1176
    %v1178 = vpop.f32.mrf.mxu0
    %v1179 = vadd.f32 0.0, %v1178
    %v1180 = vpop.f32.mrf.mxu0
    %v1181 = vadd.f32 0.0, %v1180
    %1182 = vdwg.mxu0
    %1183 = vmatprep.subr.bf16.mxu0 %v926
    %1184 = vmatpush1.bf16.msra.mxu0 %v925
    %1185 = vmatprep.subr.bf16.mxu0 %v921
    %1186 = vmatpush1.bf16.msra.mxu0 %v920
    %1187 = vmatprep.subr.bf16.mxu0 %v916
    %1188 = vmatpush1.bf16.msra.mxu0 %v915
    %1189 = vmatprep.subr.bf16.mxu0 %v911
    %1190 = vmatpush1.bf16.msra.mxu0 %v910
    %1191 = vmatprep.subr.bf16.mxu0 %v906
    %1192 = vmatpush1.bf16.msra.mxu0 %v905
    %1193 = vmatprep.subr.bf16.mxu0 %v901
    %1194 = vmatpush1.bf16.msra.mxu0 %v900
    %1195 = vmatprep.subr.bf16.mxu0 %v896
    %1196 = vmatpush1.bf16.msra.mxu0 %v895
    %1197 = vmatprep.subr.bf16.mxu0 %v891
    %1198 = vmatpush1.bf16.msra.mxu0 %v890
    %1199 = vmatprep.subr.bf16.mxu0 %v966
    %1200 = vmatpush2.bf16.msra.mxu0 %v965
    %1201 = vmatprep.subr.bf16.mxu0 %v961
    %1202 = vmatpush2.bf16.msra.mxu0 %v960
    %1203 = vmatprep.subr.bf16.mxu0 %v956
    %1204 = vmatpush2.bf16.msra.mxu0 %v955
    %1205 = vmatprep.subr.bf16.mxu0 %v951
    %1206 = vmatpush2.bf16.msra.mxu0 %v950
    %1207 = vmatprep.subr.bf16.mxu0 %v946
    %1208 = vmatpush2.bf16.msra.mxu0 %v945
    %1209 = vmatprep.subr.bf16.mxu0 %v941
    %1210 = vmatpush2.bf16.msra.mxu0 %v940
    %1211 = vmatprep.subr.bf16.mxu0 %v936
    %1212 = vmatpush2.bf16.msra.mxu0 %v935
    %1213 = vmatprep.subr.bf16.mxu0 %v931
    %1214 = vmatpush2.bf16.msra.mxu0 %v930
    %1215 = vmatprep.mubr.bf16.mxu0 %v285
    %1216 = vmatmul.mubr.bf16.gmra.mxu0 %v284
    %v1217 = vpop.f32.mrf.mxu0
    %v1218 = vadd.f32 %v1165, %v1217
    %v1219 = vpop.f32.mrf.mxu0
    %v1220 = vadd.f32 %v1167, %v1219
    %v1221 = vpop.f32.mrf.mxu0
    %v1222 = vadd.f32 %v1169, %v1221
    %v1223 = vpop.f32.mrf.mxu0
    %v1224 = vadd.f32 %v1171, %v1223
    %1225 = vmatprep.mubr.bf16.mxu0 %v289
    %1226 = vmatmul.mubr.bf16.gmra.mxu0 %v288
    %v1227 = vpop.f32.mrf.mxu0
    %v1228 = vadd.f32 %v1175, %v1227
    %v1229 = vpop.f32.mrf.mxu0
    %v1230 = vadd.f32 %v1177, %v1229
    %v1231 = vpop.f32.mrf.mxu0
    %v1232 = vadd.f32 %v1179, %v1231
    %v1233 = vpop.f32.mrf.mxu0
    %v1234 = vadd.f32 %v1181, %v1233
    %1235 = vdwg.mxu0
    %1236 = vmatprep.subr.bf16.mxu0 %v848
    %1237 = vmatpush1.bf16.msra.mxu0 %v847
    %1238 = vmatprep.subr.bf16.mxu0 %v843
    %1239 = vmatpush1.bf16.msra.mxu0 %v842
    %1240 = vmatprep.subr.bf16.mxu0 %v838
    %1241 = vmatpush1.bf16.msra.mxu0 %v837
    %1242 = vmatprep.subr.bf16.mxu0 %v833
    %1243 = vmatpush1.bf16.msra.mxu0 %v832
    %1244 = vmatprep.subr.bf16.mxu0 %v828
    %1245 = vmatpush1.bf16.msra.mxu0 %v827
    %1246 = vmatprep.subr.bf16.mxu0 %v823
    %1247 = vmatpush1.bf16.msra.mxu0 %v822
    %1248 = vmatprep.subr.bf16.mxu0 %v818
    %1249 = vmatpush1.bf16.msra.mxu0 %v817
    %1250 = vmatprep.subr.bf16.mxu0 %v813
    %1251 = vmatpush1.bf16.msra.mxu0 %v812
    %1252 = vmatprep.subr.bf16.mxu0 %v888
    %1253 = vmatpush2.bf16.msra.mxu0 %v887
    %1254 = vmatprep.subr.bf16.mxu0 %v883
    %1255 = vmatpush2.bf16.msra.mxu0 %v882
    %1256 = vmatprep.subr.bf16.mxu0 %v878
    %1257 = vmatpush2.bf16.msra.mxu0 %v877
    %1258 = vmatprep.subr.bf16.mxu0 %v873
    %1259 = vmatpush2.bf16.msra.mxu0 %v872
    %1260 = vmatprep.subr.bf16.mxu0 %v868
    %1261 = vmatpush2.bf16.msra.mxu0 %v867
    %1262 = vmatprep.subr.bf16.mxu0 %v863
    %1263 = vmatpush2.bf16.msra.mxu0 %v862
    %1264 = vmatprep.subr.bf16.mxu0 %v858
    %1265 = vmatpush2.bf16.msra.mxu0 %v857
    %1266 = vmatprep.subr.bf16.mxu0 %v853
    %1267 = vmatpush2.bf16.msra.mxu0 %v852
    %1268 = vmatprep.mubr.bf16.mxu0 %v283
    %1269 = vmatmul.mubr.bf16.gmra.mxu0 %v282
    %v1270 = vpop.f32.mrf.mxu0
    %v1271 = vadd.f32 0.0, %v1270
    %v1272 = vpop.f32.mrf.mxu0
    %v1273 = vadd.f32 0.0, %v1272
    %v1274 = vpop.f32.mrf.mxu0
    %v1275 = vadd.f32 0.0, %v1274
    %v1276 = vpop.f32.mrf.mxu0
    %v1277 = vadd.f32 0.0, %v1276
    %1278 = vmatprep.mubr.bf16.mxu0 %v287
    %1279 = vmatmul.mubr.bf16.gmra.mxu0 %v286
    %v1280 = vpop.f32.mrf.mxu0
    %v1281 = vadd.f32 0.0, %v1280
    %v1282 = vpop.f32.mrf.mxu0
    %v1283 = vadd.f32 0.0, %v1282
    %v1284 = vpop.f32.mrf.mxu0
    %v1285 = vadd.f32 0.0, %v1284
    %v1286 = vpop.f32.mrf.mxu0
    %v1287 = vadd.f32 0.0, %v1286
    %1288 = vdwg.mxu0
    %1289 = vmatprep.subr.bf16.mxu0 %v928
    %1290 = vmatpush1.bf16.msra.mxu0 %v927
    %1291 = vmatprep.subr.bf16.mxu0 %v923
    %1292 = vmatpush1.bf16.msra.mxu0 %v922
    %1293 = vmatprep.subr.bf16.mxu0 %v918
    %1294 = vmatpush1.bf16.msra.mxu0 %v917
    %1295 = vmatprep.subr.bf16.mxu0 %v913
    %1296 = vmatpush1.bf16.msra.mxu0 %v912
    %1297 = vmatprep.subr.bf16.mxu0 %v908
    %1298 = vmatpush1.bf16.msra.mxu0 %v907
    %1299 = vmatprep.subr.bf16.mxu0 %v903
    %1300 = vmatpush1.bf16.msra.mxu0 %v902
    %1301 = vmatprep.subr.bf16.mxu0 %v898
    %1302 = vmatpush1.bf16.msra.mxu0 %v897
    %1303 = vmatprep.subr.bf16.mxu0 %v893
    %1304 = vmatpush1.bf16.msra.mxu0 %v892
    %1305 = vmatprep.subr.bf16.mxu0 %v968
    %1306 = vmatpush2.bf16.msra.mxu0 %v967
    %1307 = vmatprep.subr.bf16.mxu0 %v963
    %1308 = vmatpush2.bf16.msra.mxu0 %v962
    %1309 = vmatprep.subr.bf16.mxu0 %v958
    %1310 = vmatpush2.bf16.msra.mxu0 %v957
    %1311 = vmatprep.subr.bf16.mxu0 %v953
    %1312 = vmatpush2.bf16.msra.mxu0 %v952
    %1313 = vmatprep.subr.bf16.mxu0 %v948
    %1314 = vmatpush2.bf16.msra.mxu0 %v947
    %1315 = vmatprep.subr.bf16.mxu0 %v943
    %1316 = vmatpush2.bf16.msra.mxu0 %v942
    %1317 = vmatprep.subr.bf16.mxu0 %v938
    %1318 = vmatpush2.bf16.msra.mxu0 %v937
    %1319 = vmatprep.subr.bf16.mxu0 %v933
    %1320 = vmatpush2.bf16.msra.mxu0 %v932
    %1321 = vmatprep.mubr.bf16.mxu0 %v285
    %1322 = vmatmul.mubr.bf16.gmra.mxu0 %v284
    %v1323 = vpop.f32.mrf.mxu0
    %v1324 = vadd.f32 %v1271, %v1323
    %v1325 = vpop.f32.mrf.mxu0
    %v1326 = vadd.f32 %v1273, %v1325
    %v1327 = vpop.f32.mrf.mxu0
    %v1328 = vadd.f32 %v1275, %v1327
    %v1329 = vpop.f32.mrf.mxu0
    %v1330 = vadd.f32 %v1277, %v1329
    %1331 = vmatprep.mubr.bf16.mxu0 %v289
    %1332 = vmatmul.mubr.bf16.gmra.mxu0 %v288
    %v1333 = vpop.f32.mrf.mxu0
    %v1334 = vadd.f32 %v1281, %v1333
    %v1335 = vpop.f32.mrf.mxu0
    %v1336 = vadd.f32 %v1283, %v1335
    %v1337 = vpop.f32.mrf.mxu0
    %v1338 = vadd.f32 %v1285, %v1337
    %v1339 = vpop.f32.mrf.mxu0
    %v1340 = vadd.f32 %v1287, %v1339
    %1341 = vdwg.mxu0
    %1342 = vmatprep.subr.bf16.mxu0 0
    %1343 = vmatpush1.bf16.msra.mxu0 %v849
    %1344 = vmatprep.subr.bf16.mxu0 0
    %1345 = vmatpush1.bf16.msra.mxu0 %v844
    %1346 = vmatprep.subr.bf16.mxu0 0
    %1347 = vmatpush1.bf16.msra.mxu0 %v839
    %1348 = vmatprep.subr.bf16.mxu0 0
    %1349 = vmatpush1.bf16.msra.mxu0 %v834
    %1350 = vmatprep.subr.bf16.mxu0 0
    %1351 = vmatpush1.bf16.msra.mxu0 %v829
    %1352 = vmatprep.subr.bf16.mxu0 0
    %1353 = vmatpush1.bf16.msra.mxu0 %v824
    %1354 = vmatprep.subr.bf16.mxu0 0
    %1355 = vmatpush1.bf16.msra.mxu0 %v819
    %1356 = vmatprep.subr.bf16.mxu0 0
    %1357 = vmatpush1.bf16.msra.mxu0 %v814
    %1358 = vmatprep.subr.bf16.mxu0 0
    %1359 = vmatpush2.bf16.msra.mxu0 %v889
    %1360 = vmatprep.subr.bf16.mxu0 0
    %1361 = vmatpush2.bf16.msra.mxu0 %v884
    %1362 = vmatprep.subr.bf16.mxu0 0
    %1363 = vmatpush2.bf16.msra.mxu0 %v879
    %1364 = vmatprep.subr.bf16.mxu0 0
    %1365 = vmatpush2.bf16.msra.mxu0 %v874
    %1366 = vmatprep.subr.bf16.mxu0 0
    %1367 = vmatpush2.bf16.msra.mxu0 %v869
    %1368 = vmatprep.subr.bf16.mxu0 0
    %1369 = vmatpush2.bf16.msra.mxu0 %v864
    %1370 = vmatprep.subr.bf16.mxu0 0
    %1371 = vmatpush2.bf16.msra.mxu0 %v859
    %1372 = vmatprep.subr.bf16.mxu0 0
    %1373 = vmatpush2.bf16.msra.mxu0 %v854
    %1374 = vmatprep.mubr.bf16.mxu0 %v283
    %1375 = vmatmul.mubr.bf16.gmra.mxu0 %v282
    %v1376 = vpop.f32.mrf.mxu0
    %v1377 = vadd.f32 0.0, %v1376
    %v1378 = vpop.f32.mrf.mxu0
    %v1379 = vpop.f32.mrf.mxu0
    %v1380 = vadd.f32 0.0, %v1379
    %v1381 = vpop.f32.mrf.mxu0
    %1382 = vmatprep.mubr.bf16.mxu0 %v287
    %1383 = vmatmul.mubr.bf16.gmra.mxu0 %v286
    %v1384 = vpop.f32.mrf.mxu0
    %v1385 = vadd.f32 0.0, %v1384
    %v1386 = vpop.f32.mrf.mxu0
    %v1387 = vpop.f32.mrf.mxu0
    %v1388 = vadd.f32 0.0, %v1387
    %v1389 = vpop.f32.mrf.mxu0
    %1390 = vdwg.mxu0
    %1391 = vmatprep.subr.bf16.mxu0 0
    %1392 = vmatpush1.bf16.msra.mxu0 %v929
    %1393 = vmatprep.subr.bf16.mxu0 0
    %1394 = vmatpush1.bf16.msra.mxu0 %v924
    %1395 = vmatprep.subr.bf16.mxu0 0
    %1396 = vmatpush1.bf16.msra.mxu0 %v919
    %1397 = vmatprep.subr.bf16.mxu0 0
    %1398 = vmatpush1.bf16.msra.mxu0 %v914
    %1399 = vmatprep.subr.bf16.mxu0 0
    %1400 = vmatpush1.bf16.msra.mxu0 %v909
    %1401 = vmatprep.subr.bf16.mxu0 0
    %1402 = vmatpush1.bf16.msra.mxu0 %v904
    %1403 = vmatprep.subr.bf16.mxu0 0
    %1404 = vmatpush1.bf16.msra.mxu0 %v899
    %1405 = vmatprep.subr.bf16.mxu0 0
    %1406 = vmatpush1.bf16.msra.mxu0 %v894
    %1407 = vmatprep.subr.bf16.mxu0 0
    %1408 = vmatpush2.bf16.msra.mxu0 %v969
    %1409 = vmatprep.subr.bf16.mxu0 0
    %1410 = vmatpush2.bf16.msra.mxu0 %v964
    %1411 = vmatprep.subr.bf16.mxu0 0
    %1412 = vmatpush2.bf16.msra.mxu0 %v959
    %1413 = vmatprep.subr.bf16.mxu0 0
    %1414 = vmatpush2.bf16.msra.mxu0 %v954
    %1415 = vmatprep.subr.bf16.mxu0 0
    %1416 = vmatpush2.bf16.msra.mxu0 %v949
    %1417 = vmatprep.subr.bf16.mxu0 0
    %1418 = vmatpush2.bf16.msra.mxu0 %v944
    %1419 = vmatprep.subr.bf16.mxu0 0
    %1420 = vmatpush2.bf16.msra.mxu0 %v939
    %1421 = vmatprep.subr.bf16.mxu0 0
    %1422 = vmatpush2.bf16.msra.mxu0 %v934
    %1423 = vmatprep.mubr.bf16.mxu0 %v285
    %1424 = vmatmul.mubr.bf16.gmra.mxu0 %v284
    %v1425 = vpop.f32.mrf.mxu0
    %v1426 = vadd.f32 %v1377, %v1425
    %v1427 = vpop.f32.mrf.mxu0
    %v1428 = vpop.f32.mrf.mxu0
    %v1429 = vadd.f32 %v1380, %v1428
    %v1430 = vpop.f32.mrf.mxu0
    %1431 = vmatprep.mubr.bf16.mxu0 %v289
    %1432 = vmatmul.mubr.bf16.gmra.mxu0 %v288
    %v1433 = vpop.f32.mrf.mxu0
    %v1434 = vadd.f32 %v1385, %v1433
    %v1435 = vpop.f32.mrf.mxu0
    %v1436 = vpop.f32.mrf.mxu0
    %v1437 = vadd.f32 %v1388, %v1436
    %v1438 = vpop.f32.mrf.mxu0
    %1439 = vdwg.mxu0
    %v1440 = vadd.f32 %v38, %v1218
    %v1441 = vadd.f32 %v39, %v1220
    %v1442 = vadd.f32 %v40, %v1324
    %v1443 = vadd.f32 %v41, %v1326
    %v1444 = vadd.f32 %v42, %v1426
    %v1445 = vadd.f32 %v43, %v1222
    %v1446 = vadd.f32 %v44, %v1224
    %v1447 = vadd.f32 %v45, %v1328
    %v1448 = vadd.f32 %v46, %v1330
    %v1449 = vadd.f32 %v47, %v1429
    %v1450 = vadd.f32 %v48, %v1228
    %v1451 = vadd.f32 %v49, %v1230
    %v1452 = vadd.f32 %v50, %v1334
    %v1453 = vadd.f32 %v51, %v1336
    %v1454 = vadd.f32 %v52, %v1434
    %v1455 = vadd.f32 %v53, %v1232
    %v1456 = vadd.f32 %v54, %v1234
    %v1457 = vadd.f32 %v55, %v1338
    %v1458 = vadd.f32 %v56, %v1340
    %v1459 = vadd.f32 %v57, %v1437
    %1460 = vst [vmem:[#allocation2] sm:$0xff] %v1440
    %1461 = vst [vmem:[#allocation2 + $0x8] sm:$0xff] %v1441
    %1462 = vst [vmem:[#allocation2 + $0x10] sm:$0xff] %v1442
    %1463 = vst [vmem:[#allocation2 + $0x18] sm:$0xff] %v1443
    %vm1464 = vcmask 130048
    %1465 = vst.msk [vmem:[#allocation2 + $0x20] sm:$0xff] %vm1464, %v1444
    %1466 = vst [vmem:[#allocation2 + $0x28] sm:$0xff] %v1445
    %1467 = vst [vmem:[#allocation2 + $0x30] sm:$0xff] %v1446
    %1468 = vst [vmem:[#allocation2 + $0x38] sm:$0xff] %v1447
    %1469 = vst [vmem:[#allocation2 + $0x40] sm:$0xff] %v1448
    %1470 = vst.msk [vmem:[#allocation2 + $0x48] sm:$0xff] %vm1464, %v1449
    %1471 = vst [vmem:[#allocation2 + $0x50] sm:$0xff] %v1450
    %1472 = vst [vmem:[#allocation2 + $0x58] sm:$0xff] %v1451
    %1473 = vst [vmem:[#allocation2 + $0x60] sm:$0xff] %v1452
    %1474 = vst [vmem:[#allocation2 + $0x68] sm:$0xff] %v1453
    %1475 = vst.msk [vmem:[#allocation2 + $0x70] sm:$0xff] %vm1464, %v1454
    %1476 = vst [vmem:[#allocation2 + $0x78] sm:$0xff] %v1455
    %1477 = vst [vmem:[#allocation2 + $0x80] sm:$0xff] %v1456
    %1478 = vst [vmem:[#allocation2 + $0x88] sm:$0xff] %v1457
    %1479 = vst [vmem:[#allocation2 + $0x90] sm:$0xff] %v1458
    %1480 = vst.msk [vmem:[#allocation2 + $0x98] sm:$0xff] %vm1464, %v1459
    // Predicated region
    $region14: #{tpu_custom_call.1} parent=1 // pred_check
      %p1481 = pneg %p13
    $region15: #{tpu_custom_call.1} parent=1 // pred_check_branch
      %1483 = sbr.rel (%p1481) target = $region17
    $region16: #{tpu_custom_call.1} parent=1 // pred_region
      %v1484 = vld [vmem:[#allocation2] sm:$0xff]
      %v1485 = vld [vmem:[#allocation2 + $0x8] sm:$0xff]
      %v1486 = vld [vmem:[#allocation2 + $0x10] sm:$0xff]
      %v1487 = vld [vmem:[#allocation2 + $0x18] sm:$0xff]
      %v1488 = vld [vmem:[#allocation2 + $0x20] sm:$0xff]
      %v1489 = vld [vmem:[#allocation2 + $0x28] sm:$0xff]
      %v1490 = vld [vmem:[#allocation2 + $0x30] sm:$0xff]
      %v1491 = vld [vmem:[#allocation2 + $0x38] sm:$0xff]
      %v1492 = vld [vmem:[#allocation2 + $0x40] sm:$0xff]
      %v1493 = vld [vmem:[#allocation2 + $0x48] sm:$0xff]
      %v1494 = vld [vmem:[#allocation2 + $0x50] sm:$0xff]
      %v1495 = vld [vmem:[#allocation2 + $0x58] sm:$0xff]
      %v1496 = vld [vmem:[#allocation2 + $0x60] sm:$0xff]
      %v1497 = vld [vmem:[#allocation2 + $0x68] sm:$0xff]
      %v1498 = vld [vmem:[#allocation2 + $0x70] sm:$0xff]
      %v1499 = vld [vmem:[#allocation2 + $0x78] sm:$0xff]
      %v1500 = vld [vmem:[#allocation2 + $0x80] sm:$0xff]
      %v1501 = vld [vmem:[#allocation2 + $0x88] sm:$0xff]
      %v1502 = vld [vmem:[#allocation2 + $0x90] sm:$0xff]
      %v1503 = vld [vmem:[#allocation2 + $0x98] sm:$0xff]
      %v1504 = vpack.c.bf16 %v1489, %v1484
      %v1505 = vpack.c.bf16 %v1490, %v1485
      %v1506 = vpack.c.bf16 %v1491, %v1486
      %v1507 = vpack.c.bf16 %v1492, %v1487
      %v1508 = vpack.c.bf16 %v1493, %v1488
      %v1509 = vpack.c.bf16 %v1499, %v1494
      %v1510 = vpack.c.bf16 %v1500, %v1495
      %v1511 = vpack.c.bf16 %v1501, %v1496
      %v1512 = vpack.c.bf16 %v1502, %v1497
      %v1513 = vpack.c.bf16 %v1503, %v1498
      %v1524 = vunpack.c.l.b16 %v1504
      %v1525 = vunpack.c.l.b16 %v1505
      %v1526 = vunpack.c.l.b16 %v1506
      %v1527 = vunpack.c.l.b16 %v1507
      %v1528 = vunpack.c.l.b16 %v1508
      %v1529 = vunpack.c.h.b16 %v1504
      %v1530 = vunpack.c.h.b16 %v1505
      %v1531 = vunpack.c.h.b16 %v1506
      %v1532 = vunpack.c.h.b16 %v1507
      %v1533 = vunpack.c.h.b16 %v1508
      %v1534 = vunpack.c.l.b16 %v1509
      %v1535 = vunpack.c.l.b16 %v1510
      %v1536 = vunpack.c.l.b16 %v1511
      %v1537 = vunpack.c.l.b16 %v1512
      %v1538 = vunpack.c.l.b16 %v1513
      %v1539 = vunpack.c.h.b16 %v1509
      %v1540 = vunpack.c.h.b16 %v1510
      %v1541 = vunpack.c.h.b16 %v1511
      %v1542 = vunpack.c.h.b16 %v1512
      %v1543 = vunpack.c.h.b16 %v1513
      %v1544 = vpack.c.b16 %v1525, %v1524
      %v1545 = vpack.c.b16 %v1527, %v1526
      %v1546 = vpack.c.b16 %v1528, %v1528
      %v1547 = vpack.c.b16 %v1530, %v1529
      %v1548 = vpack.c.b16 %v1532, %v1531
      %v1549 = vpack.c.b16 %v1533, %v1533
      %v1550 = vpack.c.b16 %v1535, %v1534
      %v1551 = vpack.c.b16 %v1537, %v1536
      %v1552 = vpack.c.b16 %v1538, %v1538
      %v1553 = vpack.c.b16 %v1540, %v1539
      %v1554 = vpack.c.b16 %v1542, %v1541
      %v1555 = vpack.c.b16 %v1543, %v1543
      %1568 = vst [vmem:[#allocation3] sm:$0xff] %v1544
      %1569 = vst [vmem:[#allocation3 + $0x8] sm:$0xff] %v1545
      %vm1570 = vcmask 125952
      %1571 = vst.msk [vmem:[#allocation3 + $0x10] sm:$0xf] %vm1570, %v1546
      %1572 = vst [vmem:[#allocation3 + $0x14] sm:$0xff] %v1547
      %1573 = vst [vmem:[#allocation3 + $0x1c] sm:$0xff] %v1548
      %1574 = vst.msk [vmem:[#allocation3 + $0x24] sm:$0xf] %vm1570, %v1549
      %1575 = vst [vmem:[#allocation3 + $0x28] sm:$0xff] %v1550
      %1576 = vst [vmem:[#allocation3 + $0x30] sm:$0xff] %v1551
      %1577 = vst.msk [vmem:[#allocation3 + $0x38] sm:$0xf] %vm1570, %v1552
      %1578 = vst [vmem:[#allocation3 + $0x3c] sm:$0xff] %v1553
      %1579 = vst [vmem:[#allocation3 + $0x44] sm:$0xff] %v1554
      %1580 = vst.msk [vmem:[#allocation3 + $0x4c] sm:$0xf] %vm1570, %v1555
    $region17: #{tpu_custom_call.1} parent=1 // pred_fallthru
      _
    // Predicated region
    $region18: #{tpu_custom_call.1} parent=1 // pred_check
      _
    $region19: #{tpu_custom_call.1} parent=1 // pred_check_branch
      %1582 = sbr.rel (0) target = $region21
    $region20: #{tpu_custom_call.1} parent=1 // pred_region
      %s1584 = ssub.s32 1280, 1280
      %1585 = vsyncadd [#allocation4], %s1584
      %s1586 = sshll.u32 [#allocation3], 4
      %s1587 = int_to_ptr.vmem [resolvable:$true] %s1586
      %1592 = dma.vmem_to_hbm [thread:$0]  %s1587, 1280, %s2, [#allocation4], 320, 320, 20
    $region21: #{tpu_custom_call.1} parent=1 // pred_fallthru
      _
    // Predicated region
    $region22: #{tpu_custom_call.1} parent=1 // pred_check
      _
    $region23: #{tpu_custom_call.1} parent=1 // pred_check_branch
      %1594 = sbr.rel (0) target = $region25
    $region24: #{tpu_custom_call.1} parent=1 // pred_region
      %1595 = dma.done [#allocation4], 1280
    $region25: #{tpu_custom_call.1} parent=1 // pred_fallthru
      _
    %1596 = vsyncpa [#allocation4], 1

</llo_original>
